<compile_context>
chip_gen: v6e
topology: v6e:2x2x1
jax: 0.10.0
libtpu: 0.0.40
codegen_flags: <defaults>
</compile_context>

<pallas_src>
import math
import functools

import jax
import jax.numpy as jnp
from jax.experimental import pallas as pl
from jax.experimental.pallas import tpu as pltpu

_MIB = 1 << 20

_ACTIVATIONS = {
    "relu": lambda h: jnp.maximum(h, 0.0),
    "gelu": jax.nn.gelu,
    "tanh": jnp.tanh,
    "sigmoid": jax.nn.sigmoid,
}


def _round_up(x, m):
    return ((x + m - 1) // m) * m


def _round_down(x, m):
    return (x // m) * m


# ---------------------------------------------------------------------------
# Kernels
# ---------------------------------------------------------------------------

def _ntk_mlp_kernel_resident(x_ref, w1t_ref, b1_ref, w2t_ref, o_ref, *,
                             act, compute_dtype):
    """Both GEMMs fused; weights resident in VMEM across the batch grid."""
    # Cast the streamed x tile in-kernel (no wrapper-side astype pass over HBM).
    x = x_ref[...].astype(compute_dtype)
    h = jnp.dot(x, w1t_ref[...], preferred_element_type=jnp.float32)
    h = act(h + b1_ref[...])
    out = jnp.dot(h.astype(compute_dtype), w2t_ref[...],
                  preferred_element_type=jnp.float32)
    o_ref[...] = out.astype(o_ref.dtype)


def _ntk_mlp_kernel_ktiled(x_ref, w1t_ref, b1_ref, w2t_ref, o_ref, acc_ref, *,
                           act, compute_dtype):
    """Fallback when W1^T does not fit VMEM: stream it in (tk, hidden) slabs.

    Grid = (batch_tiles, k_tiles).  First-layer partial products accumulate in
    an f32 scratch; activation + second GEMM run at the last k step.
    """
    k = pl.program_id(1)

    @pl.when(k == 0)
    def _init():
        acc_ref[...] = jnp.zeros_like(acc_ref)

    x = x_ref[...].astype(compute_dtype)
    acc_ref[...] += jnp.dot(x, w1t_ref[...], preferred_element_type=jnp.float32)

    @pl.when(k == pl.num_programs(1) - 1)
    def _finalize():
        h = act(acc_ref[...] + b1_ref[...])
        out = jnp.dot(h.astype(compute_dtype), w2t_ref[...],
                      preferred_element_type=jnp.float32)
        o_ref[...] = out.astype(o_ref.dtype)


# ---------------------------------------------------------------------------
# Weight packing (hoist out of the per-step forward when weights are static)
# ---------------------------------------------------------------------------

def prepare_ntk_weights(w1, b1, w2, *, compute_dtype=jnp.bfloat16, block_k=None):
    """One-time packing of the NTK weights.

    Folds the 1/sqrt(fan_in) NTK scales into pre-transposed weights, casts them
    to the compute dtype, pads the logits dim to a 128-lane-dense width, and
    (optionally) zero-pads in_dim to a multiple of `block_k` for the K-tiled
    path.
    """
    w1 = jnp.asarray(w1)
    w2 = jnp.asarray(w2)
    b1 = jnp.asarray(b1)
    hidden, in_dim = w1.shape
    num_classes, hidden2 = w2.shape
    assert hidden2 == hidden and b1.shape == (hidden,)

    scale1 = 1.0 / math.sqrt(in_dim)
    scale2 = 1.0 / math.sqrt(hidden)

    w1t = (w1.T * scale1).astype(compute_dtype)                    # (in_dim, hidden)
    nc_pad = _round_up(num_classes, 128)
    w2t = jnp.pad(w2.T * scale2, ((0, 0), (0, nc_pad - num_classes)))
    w2t = w2t.astype(compute_dtype)                                # (hidden, nc_pad)
    b1_2d = b1.reshape(1, hidden).astype(jnp.float32)

    in_pad = in_dim
    if block_k is not None:
        assert block_k % 128 == 0, "block_k must be a multiple of 128"
        in_pad = _round_up(in_dim, block_k)
        if in_pad != in_dim:
            # Zero rows contribute nothing to the first GEMM.
            w1t = jnp.pad(w1t, ((0, in_pad - in_dim), (0, 0)))

    return dict(w1t=w1t, b1=b1_2d, w2t=w2t, in_dim=in_dim, in_pad=in_pad,
                hidden=hidden, num_classes=num_classes, nc_pad=nc_pad,
                compute_dtype=jnp.dtype(compute_dtype), block_k=block_k)


# ---------------------------------------------------------------------------
# Hardware queries
# ---------------------------------------------------------------------------

def _vmem_capacity_bytes():
    try:
        return int(pltpu.get_tpu_info().vmem_capacity_bytes)
    except Exception:
        return 64 * _MIB          # conservative (v7x-sized) fallback


def _grid_semantics(n_axes):
    """Batch axis parallel; CORE_PARALLEL on v7x (2 TensorCores/chip)."""
    try:
        kind = jax.devices()[0].device_kind.lower()
    except Exception:
        kind = ""
    if "v7" in kind:
        batch_sem = getattr(pltpu, "CORE_PARALLEL", "parallel")
        arb_sem = getattr(pltpu, "ARBITRARY", "arbitrary")
    else:
        batch_sem, arb_sem = "parallel", "arbitrary"
    return (batch_sem,) if n_axes == 1 else (batch_sem, arb_sem)


# ---------------------------------------------------------------------------
# Forward pass
# ---------------------------------------------------------------------------

def ntk_two_layer_mlp_prepared(x, prep, *, activation="relu", block_batch=256,
                               out_dtype=jnp.float32, vmem_budget_bytes=None):
    """Forward pass of NTKTwoLayerMLP from pre-packed weights.

    Returns logits of shape (batch, num_classes) in `out_dtype` (f32 default).
    """
    act = _ACTIVATIONS[activation]

    x = jnp.asarray(x)
    if x.ndim > 2:
        x = x.reshape(x.shape[0], -1)
    batch, in_dim = x.shape
    assert in_dim == prep["in_dim"], "x feature dim does not match weights"

    compute_dtype = prep["compute_dtype"]
    hidden = prep["hidden"]
    nc_pad = prep["nc_pad"]
    num_classes = prep["num_classes"]

    xb = x.dtype.itemsize
    cb = compute_dtype.itemsize
    ob = jnp.dtype(out_dtype).itemsize

    capacity = _vmem_capacity_bytes()
    budget = (int(vmem_budget_bytes) if vmem_budget_bytes is not None
              else capacity - 20 * _MIB)   # ~108 MiB on v5e/v6e, ~44 MiB on v7x

    # ---- VMEM working-set estimates (weights counted once: Buffered(1)) ----
    def resident_need(tb_):
        weights = (prep["in_pad"] * hidden * cb       # W1^T (single buffer)
                   + hidden * nc_pad * cb             # W2^T (single buffer)
                   + hidden * 4)                      # b1
        tiles = 2 * tb_ * in_dim * xb + 2 * tb_ * nc_pad * ob   # double-buffered
        live = tb_ * in_dim * cb + tb_ * hidden * (4 + cb) + tb_ * nc_pad * 4
        return weights + tiles + live

    def ktiled_need(tb_, tk_):
        weights = (2 * tk_ * hidden * cb              # streamed W1^T slabs
                   + hidden * nc_pad * cb + hidden * 4)
        tiles = 2 * tb_ * tk_ * xb + 2 * tb_ * nc_pad * ob
        scratch = tb_ * hidden * 4                    # f32 accumulator
        live = tb_ * tk_ * cb + tb_ * hidden * cb + tb_ * nc_pad * 4
        return weights + tiles + scratch + live

    # ---- batch tile: 128-aligned, >= 2 grid steps whenever batch allows ----
    if batch <= 128:
        tb = batch                   # block == full dim (always layout-legal)
    else:
        cap = min(block_batch, _round_down(batch, 128),
                  max(128, _round_down(batch // 2, 128)))
        tb = max(128, _round_down(cap, 128))

    use_ktiled = prep["block_k"] is not None
    if not use_ktiled and resident_need(tb) > budget:
        while tb > 128 and resident_need(tb) > budget:
            tb = max(128, _round_down(tb // 2, 128))
        use_ktiled = resident_need(tb) > budget

    w1t = prep["w1t"]
    x_in = x
    if use_ktiled:
        if prep["block_k"] is not None:
            tk = prep["block_k"]
            in_pad = prep["in_pad"]
        else:
            tk = min(2048, _round_up(in_dim, 128))
            while tk > 128 and ktiled_need(tb, tk) > budget:
                tk = max(128, _round_down(tk // 2, 128))
            while tb > 128 and batch > 128 and ktiled_need(tb, tk) > budget:
                tb = max(128, _round_down(tb // 2, 128))
            # TODO(synk): if W2^T alone still exceeds the budget, the second
            # GEMM would also need hidden-dim tiling; not implemented.
            k_guess = pl.cdiv(in_dim, tk)
            tk = _round_up(pl.cdiv(in_dim, k_guess), 128)
            in_pad = tk * k_guess
            if w1t.shape[0] != in_pad:
                w1t = jnp.pad(w1t, ((0, in_pad - w1t.shape[0]), (0, 0)))
        if in_pad != in_dim:
            # K-axis padding must be zeros (it feeds the accumulation), unlike
            # batch padding, which is simply masked at the output store.
            x_in = jnp.pad(x, ((0, 0), (0, in_pad - in_dim)))
        k_tiles = in_pad // tk
        need = ktiled_need(tb, tk)
    else:
        tk = in_dim
        k_tiles = 1
        need = resident_need(tb)

    b_tiles = pl.cdiv(batch, tb)
    vmem_limit = int(min(capacity - 4 * _MIB, max(need + 16 * _MIB, 48 * _MIB)))

    def build_and_call(single_buffer_weights):
        wmode = ({"pipeline_mode": pl.Buffered(1)}
                 if single_buffer_weights else {})
        if not use_ktiled:
            grid = (b_tiles,)
            in_specs = [
                pl.BlockSpec((tb, in_dim), lambda i: (i, 0)),               # x
                pl.BlockSpec((in_dim, hidden), lambda i: (0, 0), **wmode),  # W1^T
                pl.BlockSpec((1, hidden), lambda i: (0, 0), **wmode),       # b1
                pl.BlockSpec((hidden, nc_pad), lambda i: (0, 0), **wmode),  # W2^T
            ]
            out_specs = pl.BlockSpec((tb, nc_pad), lambda i: (i, 0))
            scratch = ()
            kernel = functools.partial(_ntk_mlp_kernel_resident, act=act,
                                       compute_dtype=compute_dtype)
        else:
            grid = (b_tiles, k_tiles)
            in_specs = [
                pl.BlockSpec((tb, tk), lambda i, k: (i, k)),                # x slab
                pl.BlockSpec((tk, hidden), lambda i, k: (k, 0)),            # W1^T slab
                pl.BlockSpec((1, hidden), lambda i, k: (0, 0), **wmode),    # b1
                pl.BlockSpec((hidden, nc_pad), lambda i, k: (0, 0), **wmode),
            ]
            out_specs = pl.BlockSpec((tb, nc_pad), lambda i, k: (i, 0))
            scratch = [pltpu.VMEM((tb, hidden), jnp.float32)]
            kernel = functools.partial(_ntk_mlp_kernel_ktiled, act=act,
                                       compute_dtype=compute_dtype)

        return pl.pallas_call(
            kernel,
            out_shape=jax.ShapeDtypeStruct((batch, nc_pad), out_dtype),
            grid_spec=pltpu.PrefetchScalarGridSpec(
                num_scalar_prefetch=0,
                grid=grid,
                in_specs=in_specs,
                out_specs=out_specs,
                scratch_shapes=scratch,
            ),
            compiler_params=pltpu.CompilerParams(
                dimension_semantics=_grid_semantics(len(grid)),
                vmem_limit_bytes=vmem_limit,
            ),
        )(x_in, w1t, prep["b1"], prep["w2t"])

    try:
        out = build_and_call(single_buffer_weights=True)
    except Exception:
        # Defensive fallback if this jax build rejects Buffered(1) specs.
        out = build_and_call(single_buffer_weights=False)

    # Strip the 128-lane class padding (cheap; fuses into the consumer).
    return out[:, :num_classes]


def ntk_two_layer_mlp(x, w1, b1, w2, *, activation="relu",
                      compute_dtype=jnp.bfloat16, block_batch=256,
                      block_k=None, out_dtype=jnp.float32,
                      vmem_budget_bytes=None):
    """Convenience wrapper: packs weights per call.  Prefer
    prepare_ntk_weights + ntk_two_layer_mlp_prepared when weights are static."""
    prep = prepare_ntk_weights(w1, b1, w2, compute_dtype=compute_dtype,
                               block_k=block_k)
    return ntk_two_layer_mlp_prepared(
        x, prep, activation=activation, block_batch=block_batch,
        out_dtype=out_dtype, vmem_budget_bytes=vmem_budget_bytes)


def ntk_two_layer_mlp_ref(x, w1, b1, w2, activation="relu"):
    """Pure-JAX f32 reference mirroring the PyTorch module."""
    x = jnp.asarray(x)
    if x.ndim > 2:
        x = x.reshape(x.shape[0], -1)
    in_dim = x.shape[1]
    hidden = w1.shape[0]
    h = (x @ w1.T) / math.sqrt(in_dim) + b1
    h = _ACTIVATIONS[activation](h)
    return (h @ w2.T) / math.sqrt(hidden)


if __name__ == "__main__":
    # Small shapes consistent with the module (flattened images -> hidden ->
    # logits); batch chosen so the batch grid has 3 steps (exercises pipelining).
    batch, in_dim, hidden, num_classes = 384, 256, 128, 10

    key = jax.random.PRNGKey(0)
    kx, kw1, kb1, kw2 = jax.random.split(key, 4)

    x = jax.random.normal(kx, (batch, in_dim), dtype=jnp.float32)
    # NTK init: standard-normal weights/bias; 1/sqrt(fan_in) lives in forward.
    w1 = jax.random.normal(kw1, (hidden, in_dim), dtype=jnp.float32)
    b1 = jax.random.normal(kb1, (hidden,), dtype=jnp.float32)
    w2 = jax.random.normal(kw2, (num_classes, hidden), dtype=jnp.float32)

    ref = ntk_two_layer_mlp_ref(x, w1, b1, w2)

    # 1) f32 compute, resident-weight path.
    out_f32 = jax.block_until_ready(
        ntk_two_layer_mlp(x, w1, b1, w2, compute_dtype=jnp.float32))
    assert out_f32.shape == (batch, num_classes)
    assert jnp.allclose(out_f32, ref, atol=1e-4, rtol=1e-4), "f32 mismatch"

    # 2) default bf16 compute (f32 accumulation): loose tolerance.
    out_bf16 = jax.block_until_ready(ntk_two_layer_mlp(x, w1, b1, w2))
    assert out_bf16.shape == (batch, num_classes)
    assert jnp.allclose(out_bf16, ref, atol=1e-1, rtol=1e-1), "bf16 mismatch"

    # 3) K-tiled fallback path (streamed W1^T + f32 accumulator), f32 compute.
    prep_k = prepare_ntk_weights(w1, b1, w2, compute_dtype=jnp.float32,
                                 block_k=128)
    out_kt = jax.block_until_ready(
        ntk_two_layer_mlp_prepared(x, prep_k, activation="relu"))
    assert out_kt.shape == (batch, num_classes)
    assert jnp.allclose(out_kt, ref, atol=1e-4, rtol=1e-4), "k-tiled mismatch"

    # 4) ragged batch (not a multiple of the 128-row tile) on the default path.
    out_rag = jax.block_until_ready(ntk_two_layer_mlp(x[:200], w1, b1, w2))
    assert out_rag.shape == (200, num_classes)
    assert jnp.allclose(out_rag, ref[:200], atol=1e-1, rtol=1e-1), "ragged mismatch"

    print("KERNEL_OK")
</pallas_src>

<mosaic_0001>
module attributes {stable_mosaic.version = 11 : i64} {
  func.func @_ntk_mlp_kernel_resident(%arg0: i32, %arg1: memref<128x256xf32, #tpu.memory_space<vmem>>, %arg2: memref<256x128xf32, #tpu.memory_space<vmem>>, %arg3: memref<1x128xf32, #tpu.memory_space<vmem>>, %arg4: memref<128x128xf32, #tpu.memory_space<vmem>>, %arg5: memref<128x128xf32, #tpu.memory_space<vmem>>) attributes {dimension_semantics = [#tpu.dimension_semantics<parallel>], iteration_bounds = array<i64: 3>, scalar_prefetch = 0 : i64, scratch_operands = 0 : i64, tpu.core_type = #tpu.core_type<tc>, window_params = [{transform_indices = @transform_0, window_bounds = array<i64: 128, 256>}, {pipeline_mode = #tpu.pipeline_mode<synchronous>, transform_indices = @transform_1, window_bounds = array<i64: 256, 128>}, {pipeline_mode = #tpu.pipeline_mode<synchronous>, transform_indices = @transform_2, window_bounds = array<i64: 1, 128>}, {pipeline_mode = #tpu.pipeline_mode<synchronous>, transform_indices = @transform_3, window_bounds = array<i64: 128, 128>}, {transform_indices = @transform_4, window_bounds = array<i64: 128, 128>}]} {
    %c0 = arith.constant 0 : index
    %c0_0 = arith.constant 0 : index
    %0 = vector.load %arg1[%c0, %c0_0] : memref<128x256xf32, #tpu.memory_space<vmem>>, vector<128x256xf32>
    %c0_1 = arith.constant 0 : index
    %c0_2 = arith.constant 0 : index
    %1 = vector.load %arg2[%c0_1, %c0_2] : memref<256x128xf32, #tpu.memory_space<vmem>>, vector<256x128xf32>
    %cst = arith.constant dense<0.000000e+00> : vector<128x128xf32>
    %2 = tpu.matmul %0, %1, %cst {dimension_numbers = #tpu.dot_dimension_numbers<[1], [0], [0], [1], [0, 0, 1, 1], [], []>} : vector<128x256xf32>, vector<256x128xf32>, vector<128x128xf32> -> vector<128x128xf32>
    %c0_3 = arith.constant 0 : index
    %c0_4 = arith.constant 0 : index
    %3 = vector.load %arg3[%c0_3, %c0_4] : memref<1x128xf32, #tpu.memory_space<vmem>>, vector<1x128xf32>
    %4 = vector.broadcast %3 : vector<1x128xf32> to vector<128x128xf32>
    %5 = arith.addf %2, %4 : vector<128x128xf32>
    %cst_5 = arith.constant 0.000000e+00 : f32
    %6 = vector.broadcast %cst_5 : f32 to vector<128x128xf32>
    %7 = arith.maximumf %5, %6 : vector<128x128xf32>
    %c0_6 = arith.constant 0 : index
    %c0_7 = arith.constant 0 : index
    %8 = vector.load %arg4[%c0_6, %c0_7] : memref<128x128xf32, #tpu.memory_space<vmem>>, vector<128x128xf32>
    %cst_8 = arith.constant dense<0.000000e+00> : vector<128x128xf32>
    %9 = tpu.matmul %7, %8, %cst_8 {dimension_numbers = #tpu.dot_dimension_numbers<[1], [0], [0], [1], [0, 0, 1, 1], [], []>} : vector<128x128xf32>, vector<128x128xf32>, vector<128x128xf32> -> vector<128x128xf32>
    %c0_9 = arith.constant 0 : index
    %c0_10 = arith.constant 0 : index
    %10 = vector.load %arg5[%c0_9, %c0_10] : memref<128x128xf32, #tpu.memory_space<vmem>>, vector<128x128xf32>
    tpu.vector_store %arg5[%c0_9, %c0_10], %9 {strides = array<i32>} : memref<128x128xf32, #tpu.memory_space<vmem>>, vector<128x128xf32>,
    return
  }
  func.func @transform_0(%arg0: i32) -> (i32, i32) {
    %c0_i32 = arith.constant 0 : i32
    %c0_i32_0 = arith.constant 0 : i32
    return %arg0, %c0_i32 : i32, i32
  }
  func.func @transform_1(%arg0: i32) -> (i32, i32) {
    %c0_i32 = arith.constant 0 : i32
    %c0_i32_0 = arith.constant 0 : i32
    %c0_i32_1 = arith.constant 0 : i32
    return %c0_i32, %c0_i32_0 : i32, i32
  }
  func.func @transform_2(%arg0: i32) -> (i32, i32) {
    %c0_i32 = arith.constant 0 : i32
    %c0_i32_0 = arith.constant 0 : i32
    %c0_i32_1 = arith.constant 0 : i32
    return %c0_i32, %c0_i32_0 : i32, i32
  }
  func.func @transform_3(%arg0: i32) -> (i32, i32) {
    %c0_i32 = arith.constant 0 : i32
    %c0_i32_0 = arith.constant 0 : i32
    %c0_i32_1 = arith.constant 0 : i32
    return %c0_i32, %c0_i32_0 : i32, i32
  }
  func.func @transform_4(%arg0: i32) -> (i32, i32) {
    %c0_i32 = arith.constant 0 : i32
    %c0_i32_0 = arith.constant 0 : i32
    return %arg0, %c0_i32 : i32, i32
  }
}

module attributes {stable_mosaic.version = 11 : i64} {
  func.func @_ntk_mlp_kernel_resident(%arg0: i32, %arg1: memref<128x256xf32, #tpu.memory_space<vmem>>, %arg2: memref<256x128xf32, #tpu.memory_space<vmem>>, %arg3: memref<1x128xf32, #tpu.memory_space<vmem>>, %arg4: memref<128x128xf32, #tpu.memory_space<vmem>>, %arg5: memref<128x128xf32, #tpu.memory_space<vmem>>) attributes {dimension_semantics = [#tpu.dimension_semantics<parallel>], iteration_bounds = array<i64: 3>, scalar_prefetch = 0 : i64, scratch_operands = 0 : i64, tpu.core_type = #tpu.core_type<tc>, window_params = [{transform_indices = @transform_0, window_bounds = array<i64: 128, 256>}, {pipeline_mode = #tpu.pipeline_mode<synchronous>, transform_indices = @transform_1, window_bounds = array<i64: 256, 128>}, {pipeline_mode = #tpu.pipeline_mode<synchronous>, transform_indices = @transform_2, window_bounds = array<i64: 1, 128>}, {pipeline_mode = #tpu.pipeline_mode<synchronous>, transform_indices = @transform_3, window_bounds = array<i64: 128, 128>}, {transform_indices = @transform_4, window_bounds = array<i64: 128, 128>}]} {
    %c0 = arith.constant 0 : index
    %c0_0 = arith.constant 0 : index
    %0 = vector.load %arg1[%c0, %c0_0] : memref<128x256xf32, #tpu.memory_space<vmem>>, vector<128x256xf32>
    %c0_1 = arith.constant 0 : index
    %c0_2 = arith.constant 0 : index
    %1 = vector.load %arg2[%c0_1, %c0_2] : memref<256x128xf32, #tpu.memory_space<vmem>>, vector<256x128xf32>
    %cst = arith.constant dense<0.000000e+00> : vector<128x128xf32>
    %2 = tpu.matmul %0, %1, %cst {dimension_numbers = #tpu.dot_dimension_numbers<[1], [0], [0], [1], [0, 0, 1, 1], [], []>} : vector<128x256xf32>, vector<256x128xf32>, vector<128x128xf32> -> vector<128x128xf32>
    %c0_3 = arith.constant 0 : index
    %c0_4 = arith.constant 0 : index
    %3 = vector.load %arg3[%c0_3, %c0_4] : memref<1x128xf32, #tpu.memory_space<vmem>>, vector<1x128xf32>
    %4 = vector.broadcast %3 : vector<1x128xf32> to vector<128x128xf32>
    %5 = arith.addf %2, %4 : vector<128x128xf32>
    %cst_5 = arith.constant 0.000000e+00 : f32
    %6 = vector.broadcast %cst_5 : f32 to vector<128x128xf32>
    %7 = arith.maximumf %5, %6 : vector<128x128xf32>
    %c0_6 = arith.constant 0 : index
    %c0_7 = arith.constant 0 : index
    %8 = vector.load %arg4[%c0_6, %c0_7] : memref<128x128xf32, #tpu.memory_space<vmem>>, vector<128x128xf32>
    %cst_8 = arith.constant dense<0.000000e+00> : vector<128x128xf32>
    %9 = tpu.matmul %7, %8, %cst_8 {dimension_numbers = #tpu.dot_dimension_numbers<[1], [0], [0], [1], [0, 0, 1, 1], [], []>} : vector<128x128xf32>, vector<128x128xf32>, vector<128x128xf32> -> vector<128x128xf32>
    %c0_9 = arith.constant 0 : index
    %c0_10 = arith.constant 0 : index
    %10 = vector.load %arg5[%c0_9, %c0_10] : memref<128x128xf32, #tpu.memory_space<vmem>>, vector<128x128xf32>
    tpu.vector_store %arg5[%c0_9, %c0_10], %9 {strides = array<i32>} : memref<128x128xf32, #tpu.memory_space<vmem>>, vector<128x128xf32>,
    return
  }
  func.func @transform_0(%arg0: i32) -> (i32, i32) {
    %c0_i32 = arith.constant 0 : i32
    %c0_i32_0 = arith.constant 0 : i32
    return %arg0, %c0_i32 : i32, i32
  }
  func.func @transform_1(%arg0: i32) -> (i32, i32) {
    %c0_i32 = arith.constant 0 : i32
    %c0_i32_0 = arith.constant 0 : i32
    %c0_i32_1 = arith.constant 0 : i32
    return %c0_i32, %c0_i32_0 : i32, i32
  }
  func.func @transform_2(%arg0: i32) -> (i32, i32) {
    %c0_i32 = arith.constant 0 : i32
    %c0_i32_0 = arith.constant 0 : i32
    %c0_i32_1 = arith.constant 0 : i32
    return %c0_i32, %c0_i32_0 : i32, i32
  }
  func.func @transform_3(%arg0: i32) -> (i32, i32) {
    %c0_i32 = arith.constant 0 : i32
    %c0_i32_0 = arith.constant 0 : i32
    %c0_i32_1 = arith.constant 0 : i32
    return %c0_i32, %c0_i32_0 : i32, i32
  }
  func.func @transform_4(%arg0: i32) -> (i32, i32) {
    %c0_i32 = arith.constant 0 : i32
    %c0_i32_0 = arith.constant 0 : i32
    return %arg0, %c0_i32 : i32, i32
  }
}

</mosaic_0001>

<llo_original>
// kernel: tpu_custom_call.1
$region0: #{tpu_custom_call.1}
  #allocation0 [shape = 'u32[]', space=smem, size = 0x4, offset = 0x4, fixed_abs, tag = 'smem constant byte address 0x4 - core index']
  #allocation1 [shape = 'u32[144,128]{1,0:T(1,128)}', space=vmem, size = 0x12000, scoped, tag = 'internal scratch']
  %s0 = inlined_call_operand.hbm [shape: f32[384,256], index: 0, kind: input, shape index: {}]
  %s1 = inlined_call_operand.hbm [shape: f32[256,128], index: 1, kind: input, shape index: {}]
  %s2 = inlined_call_operand.vmem [shape: f32[1,128], index: 2, kind: input, shape index: {}]
  %s3 = inlined_call_operand.hbm [shape: f32[128,128], index: 3, kind: input, shape index: {}]
  %s4 = inlined_call_operand.hbm [shape: f32[384,128], index: 4, kind: output, shape index: {}]
  %s5 = sld [smem:[#allocation0]]
  $region61: #{tpu_custom_call.1} parent=0
    _
  %s7 = ssub.s32 1, %s5
  %s8 = scalar_select 0, %s7, %s5
  $region1: #{tpu_custom_call.1} parent=0
    #allocation2 [shape = 'u8[262144]{0}', space=vmem, size = 0x40000, scoped, tag = 'input window, operand 0']
    #allocation3 [shape = 's32[2]{0}', space=sflag, size = 0x8, scoped, tag = 'scoped memory for tpu_custom_call.1']
    #allocation4 [shape = 's32[2]{0}', space=sflag, size = 0x8, scoped, tag = 'scoped memory for tpu_custom_call.1']
    #allocation5 [shape = 'u8[131072]{0}', space=vmem, size = 0x20000, scoped, tag = 'input window, operand 1, single buffered']
    #allocation6 [shape = 's32[1]{0}', space=sflag, size = 0x4, scoped, tag = 'scoped memory for tpu_custom_call.1']
    #allocation7 [shape = 'u8[65536]{0}', space=vmem, size = 0x10000, scoped, tag = 'input window, operand 3, single buffered']
    #allocation8 [shape = 'u8[131072]{0}', space=vmem, size = 0x20000, scoped, tag = 'output window, operand 0']
    %9 = vsyncpa [#allocation3], 0
    %s10 = scalar_lea.sflag [#allocation3], 1
    %11 = vsyncpa %s10, 0
    %12 = vsyncpa [#allocation6], 0
    %13 = vsyncpa [#allocation4], 0
    %s14 = scalar_lea.sflag [#allocation4], 1
    %15 = vsyncpa %s14, 0
    loop: start=0, step=1, limit=5
    $region2: #{tpu_custom_call.1} parent=1 // loop_pre_header
      _
    $region3: #{tpu_custom_call.1} parent=1 // loop_header
      %s17 = sphi 0, %s21
      %p18 = scmp.ge.s32.totalorder %s17, 5
      %s27 = sphi 0, %s29
      %s30 = sphi 0, %s27
      %s31 = sphi 0, %s30
      %s47 = sphi 0, %s31
      %s51 = sphi 0, %s51
      %s53 = sphi 0, %s51
      %s54 = sphi 0, %s53
      %s68 = sphi 0, %s54
      %s72 = sphi 0, %s72
      %s74 = sphi 0, %s72
      %s75 = sphi 0, %s74
      %s89 = sphi 0, %s75
      %s93 = sphi 0, %s93
      %s95 = sphi 0, %s93
      %s96 = sphi 0, %s95
      %s110 = sphi 0, %s96
      %s116 = sphi 0, %s118
      %s119 = sphi 0, %s116
      %s120 = sphi 0, %s119
      %s136 = sphi 0, %s120
    $region4: #{tpu_custom_call.1} parent=1 // loop_header_branch
      %20 = sbr.rel (%p18) target = $region8
    $region5: #{tpu_custom_call.1} parent=1 // loop_body
      %s22 = ssub.s32 %s17, 1
      %s23 = ssub.s32 %s17, 2
      %s24 = sadd.s32 %s17, 1
      %s25 = ssub.s32 %s17, %s24
      %p26 = scmp.eq.s32.totalorder %s25, 0
      %s28 = sadd.s32 %s27, 1
      %s29 = scalar_select %p26, %s27, %s28
      %p32 = pneg %p26
      %p33 = scmp.eq.s32.totalorder %s17, 2
      %p34 = por %p32, %p33
      %p35 = scmp.ne.s32.totalorder %s27, %s30
      %p36 = scmp.eq.s32.totalorder %s17, 0
      %p37 = por %p35, %p36
      %p38 = scmp.ne.s32.totalorder %s27, %s30
      %p39 = scmp.eq.s32.totalorder %s22, 2
      %p40 = por %p38, %p39
      %p41 = scmp.ne.s32.totalorder %s30, %s31
      %p42 = scmp.eq.s32.totalorder %s22, 0
      %p43 = por %p41, %p42
      %p44 = scmp.ne.s32.totalorder %s30, %s31
      %p45 = scmp.eq.s32.totalorder %s23, 2
      %p46 = por %p44, %p45
      %p48 = scmp.ne.s32.totalorder %s31, %s47
      %p49 = scmp.eq.s32.totalorder %s23, 0
      %p50 = por %p48, %p49
      %s52 = sadd.s32 %s51, 1
      %p55 = scmp.eq.s32.totalorder %s17, 2
      %p56 = scmp.ne.s32.totalorder %s51, %s53
      %p57 = scmp.eq.s32.totalorder %s17, 0
      %p58 = por %p56, %p57
      %p59 = scmp.ne.s32.totalorder %s51, %s53
      %p60 = scmp.eq.s32.totalorder %s22, 2
      %p61 = por %p59, %p60
      %p62 = scmp.ne.s32.totalorder %s53, %s54
      %p63 = scmp.eq.s32.totalorder %s22, 0
      %p64 = por %p62, %p63
      %p65 = scmp.ne.s32.totalorder %s53, %s54
      %p66 = scmp.eq.s32.totalorder %s23, 2
      %p67 = por %p65, %p66
      %p69 = scmp.ne.s32.totalorder %s54, %s68
      %p70 = scmp.eq.s32.totalorder %s23, 0
      %p71 = por %p69, %p70
      %s73 = sadd.s32 %s72, 1
      %p76 = scmp.eq.s32.totalorder %s17, 2
      %p77 = scmp.ne.s32.totalorder %s72, %s74
      %p78 = scmp.eq.s32.totalorder %s17, 0
      %p79 = por %p77, %p78
      %p80 = scmp.ne.s32.totalorder %s72, %s74
      %p81 = scmp.eq.s32.totalorder %s22, 2
      %p82 = por %p80, %p81
      %p83 = scmp.ne.s32.totalorder %s74, %s75
      %p84 = scmp.eq.s32.totalorder %s22, 0
      %p85 = por %p83, %p84
      %p86 = scmp.ne.s32.totalorder %s74, %s75
      %p87 = scmp.eq.s32.totalorder %s23, 2
      %p88 = por %p86, %p87
      %p90 = scmp.ne.s32.totalorder %s75, %s89
      %p91 = scmp.eq.s32.totalorder %s23, 0
      %p92 = por %p90, %p91
      %s94 = sadd.s32 %s93, 1
      %p97 = scmp.eq.s32.totalorder %s17, 2
      %p98 = scmp.ne.s32.totalorder %s93, %s95
      %p99 = scmp.eq.s32.totalorder %s17, 0
      %p100 = por %p98, %p99
      %p101 = scmp.ne.s32.totalorder %s93, %s95
      %p102 = scmp.eq.s32.totalorder %s22, 2
      %p103 = por %p101, %p102
      %p104 = scmp.ne.s32.totalorder %s95, %s96
      %p105 = scmp.eq.s32.totalorder %s22, 0
      %p106 = por %p104, %p105
      %p107 = scmp.ne.s32.totalorder %s95, %s96
      %p108 = scmp.eq.s32.totalorder %s23, 2
      %p109 = por %p107, %p108
      %p111 = scmp.ne.s32.totalorder %s96, %s110
      %p112 = scmp.eq.s32.totalorder %s23, 0
      %p113 = por %p111, %p112
      %s114 = ssub.s32 %s17, %s24
      %p115 = scmp.eq.s32.totalorder %s114, 0
      %s117 = sadd.s32 %s116, 1
      %s118 = scalar_select %p115, %s116, %s117
      %p121 = pneg %p115
      %p122 = scmp.eq.s32.totalorder %s17, 2
      %p123 = por %p121, %p122
      %p124 = scmp.ne.s32.totalorder %s116, %s119
      %p125 = scmp.eq.s32.totalorder %s17, 0
      %p126 = por %p124, %p125
      %p127 = scmp.ne.s32.totalorder %s116, %s119
      %p128 = scmp.eq.s32.totalorder %s22, 2
      %p129 = por %p127, %p128
      %p130 = scmp.ne.s32.totalorder %s119, %s120
      %p131 = scmp.eq.s32.totalorder %s22, 0
      %p132 = por %p130, %p131
      %p133 = scmp.ne.s32.totalorder %s119, %s120
      %p134 = scmp.eq.s32.totalorder %s23, 2
      %p135 = por %p133, %p134
      %p137 = scmp.ne.s32.totalorder %s120, %s136
      %p138 = scmp.eq.s32.totalorder %s23, 0
      %p139 = por %p137, %p138
      %p140 = scmp.le.s32.totalorder 1, %s17
      %p141 = scmp.lt.s32.totalorder %s17, 4
      %p142 = pnand %p140, %p141
      %p143 = pneg %p142
      // Predicated region
      $region9: #{tpu_custom_call.1} parent=5 // pred_check
        _
      $region10: #{tpu_custom_call.1} parent=5 // pred_check_branch
        %145 = sbr.rel (%p142) target = $region12
      $region11: #{tpu_custom_call.1} parent=5 // pred_region
        %s146 = ssub.s32 %s17, 1
        // Predicated region
        $region13: #{tpu_custom_call.1} parent=11 // pred_check
          %p147 = pneg %p64
        $region14: #{tpu_custom_call.1} parent=11 // pred_check_branch
          %149 = sbr.rel (%p147) target = $region16
        $region15: #{tpu_custom_call.1} parent=11 // pred_region
          %s151 = ssub.s32 4096, 4096
          %152 = vsyncadd [#allocation6], %s151
          %s153 = sshll.u32 [#allocation5], 4
          %s154 = int_to_ptr.vmem [resolvable:$true] %s153
          %159 = dma.hbm_to_vmem [thread:$0]  %s1, 4096, %s154, [#allocation6], 128, 128, 8
        $region16: #{tpu_custom_call.1} parent=11 // pred_fallthru
          _
        // Predicated region
        $region17: #{tpu_custom_call.1} parent=11 // pred_check
          %p160 = pneg %p85
        $region18: #{tpu_custom_call.1} parent=11 // pred_check_branch
          %162 = sbr.rel (%p160) target = $region20
        $region19: #{tpu_custom_call.1} parent=11 // pred_region
          _
        $region20: #{tpu_custom_call.1} parent=11 // pred_fallthru
          _
        // Predicated region
        $region21: #{tpu_custom_call.1} parent=11 // pred_check
          %p163 = pneg %p106
        $region22: #{tpu_custom_call.1} parent=11 // pred_check_branch
          %165 = sbr.rel (%p163) target = $region24
        $region23: #{tpu_custom_call.1} parent=11 // pred_region
          %s167 = ssub.s32 2048, 2048
          %168 = vsyncadd [#allocation6], %s167
          %s169 = sshll.u32 [#allocation7], 4
          %s170 = int_to_ptr.vmem [resolvable:$true] %s169
          %175 = dma.hbm_to_vmem [thread:$0]  %s3, 2048, %s170, [#allocation6], 128, 128, 8
        $region24: #{tpu_custom_call.1} parent=11 // pred_fallthru
          _
      $region12: #{tpu_custom_call.1} parent=5 // pred_fallthru
        _
      %p176 = scmp.lt.s32.totalorder %s17, 3
      // Predicated region
      $region25: #{tpu_custom_call.1} parent=5 // pred_check
        %p177 = pneg %p176
      $region26: #{tpu_custom_call.1} parent=5 // pred_check_branch
        %179 = sbr.rel (%p177) target = $region28
      $region27: #{tpu_custom_call.1} parent=5 // pred_region
        // Predicated region
        $region29: #{tpu_custom_call.1} parent=27 // pred_check
          %p180 = pneg %p37
        $region30: #{tpu_custom_call.1} parent=27 // pred_check_branch
          %182 = sbr.rel (%p180) target = $region32
        $region31: #{tpu_custom_call.1} parent=27 // pred_region
          %s183 = sand.u32 %s27, 1
          %s184 = scalar_lea.sflag [#allocation3], %s183
          %s185 = sand.u32 %s27, 1
          %s186 = smul.addr %s185, 256
          %s187 = scalar_lea.vmem [#allocation2], %s186
          %s188 = smul.u32 16, %s17
          %s190 = ssub.s32 4096, 4096
          %191 = vsyncadd %s184, %s190
          %s192 = smul.addr %s188, 2
          %s193 = smul.addr %s192, 128
          %s194 = scalar_lea.hbm %s0, %s193
          %s195 = sshll.u32 %s187, 4
          %s196 = int_to_ptr.vmem [resolvable:$true] %s195
          %201 = dma.hbm_to_vmem [thread:$0]  %s194, 4096, %s196, %s184, 256, 256, 16
        $region32: #{tpu_custom_call.1} parent=27 // pred_fallthru
          _
      $region28: #{tpu_custom_call.1} parent=5 // pred_fallthru
        _
      %p202 = scmp.le.s32.totalorder 1, %s17
      %p203 = scmp.lt.s32.totalorder %s17, 4
      %p204 = pnand %p202, %p203
      %p205 = pneg %p204
      // Predicated region
      $region33: #{tpu_custom_call.1} parent=5 // pred_check
        _
      $region34: #{tpu_custom_call.1} parent=5 // pred_check_branch
        %207 = sbr.rel (%p204) target = $region36
      $region35: #{tpu_custom_call.1} parent=5 // pred_region
        %s208 = ssub.s32 %s17, 1
        %s209 = sand.u32 %s30, 1
        %s210 = scalar_lea.sflag [#allocation3], %s209
        %s211 = sand.u32 %s30, 1
        %s212 = smul.addr %s211, 256
        %s213 = scalar_lea.vmem [#allocation2], %s212
        // Predicated region
        $region37: #{tpu_custom_call.1} parent=35 // pred_check
          %p214 = pneg %p43
        $region38: #{tpu_custom_call.1} parent=35 // pred_check_branch
          %216 = sbr.rel (%p214) target = $region40
        $region39: #{tpu_custom_call.1} parent=35 // pred_region
          %217 = dma.done %s210, 4096
        $region40: #{tpu_custom_call.1} parent=35 // pred_fallthru
          _
        // Predicated region
        $region41: #{tpu_custom_call.1} parent=35 // pred_check
          %p218 = pneg %p64
        $region42: #{tpu_custom_call.1} parent=35 // pred_check_branch
          %220 = sbr.rel (%p218) target = $region44
        $region43: #{tpu_custom_call.1} parent=35 // pred_region
          %221 = dma.done [#allocation6], 4096
        $region44: #{tpu_custom_call.1} parent=35 // pred_fallthru
          _
        // Predicated region
        $region45: #{tpu_custom_call.1} parent=35 // pred_check
          %p222 = pneg %p106
        $region46: #{tpu_custom_call.1} parent=35 // pred_check_branch
          %224 = sbr.rel (%p222) target = $region48
        $region47: #{tpu_custom_call.1} parent=35 // pred_region
          %225 = dma.done [#allocation6], 2048
        $region48: #{tpu_custom_call.1} parent=35 // pred_fallthru
          _
        %s226 = sand.u32 %s30, 1
        %s227 = scalar_lea.sflag [#allocation3], %s226
        %s228 = sand.u32 %s30, 1
        %s229 = smul.addr %s228, 256
        %s230 = scalar_lea.vmem [#allocation2], %s229
        %p231 = pneg %p43
        %p232 = pneg %p40
        %p233 = pneg %p64
        %p234 = pneg %p61
        %p235 = pneg %p85
        %p236 = pneg %p82
        %p237 = pneg %p106
        %p238 = pneg %p103
        %p239 = pneg %p132
        %p240 = pneg %p129
        %s241 = sand.u32 %s119, 1
        %s242 = scalar_lea.sflag [#allocation4], %s241
        %s243 = sand.u32 %s119, 1
        %s244 = smul.addr %s243, 128
        %s245 = scalar_lea.vmem [#allocation8], %s244
        %s246 = smul.u32 16, %s22
        %s247 = smul.u32 16, %s22
        %v248 = vld [vmem:[%s213] sm:$0xff]
        %v249 = vld [vmem:[%s213 + $0x8] sm:$0xff]
        %v250 = vld [vmem:[%s213 + $0x10] sm:$0xff]
        %v251 = vld [vmem:[%s213 + $0x18] sm:$0xff]
        %v252 = vld [vmem:[%s213 + $0x20] sm:$0xff]
        %v253 = vld [vmem:[%s213 + $0x28] sm:$0xff]
        %v254 = vld [vmem:[%s213 + $0x30] sm:$0xff]
        %v255 = vld [vmem:[%s213 + $0x38] sm:$0xff]
        %v256 = vld [vmem:[%s213 + $0x40] sm:$0xff]
        %v257 = vld [vmem:[%s213 + $0x48] sm:$0xff]
        %v258 = vld [vmem:[%s213 + $0x50] sm:$0xff]
        %v259 = vld [vmem:[%s213 + $0x58] sm:$0xff]
        %v260 = vld [vmem:[%s213 + $0x60] sm:$0xff]
        %v261 = vld [vmem:[%s213 + $0x68] sm:$0xff]
        %v262 = vld [vmem:[%s213 + $0x70] sm:$0xff]
        %v263 = vld [vmem:[%s213 + $0x78] sm:$0xff]
        %v264 = vld [vmem:[%s213 + $0x80] sm:$0xff]
        %v265 = vld [vmem:[%s213 + $0x88] sm:$0xff]
        %v266 = vld [vmem:[%s213 + $0x90] sm:$0xff]
        %v267 = vld [vmem:[%s213 + $0x98] sm:$0xff]
        %v268 = vld [vmem:[%s213 + $0xa0] sm:$0xff]
        %v269 = vld [vmem:[%s213 + $0xa8] sm:$0xff]
        %v270 = vld [vmem:[%s213 + $0xb0] sm:$0xff]
        %v271 = vld [vmem:[%s213 + $0xb8] sm:$0xff]
        %v272 = vld [vmem:[%s213 + $0xc0] sm:$0xff]
        %v273 = vld [vmem:[%s213 + $0xc8] sm:$0xff]
        %v274 = vld [vmem:[%s213 + $0xd0] sm:$0xff]
        %v275 = vld [vmem:[%s213 + $0xd8] sm:$0xff]
        %v276 = vld [vmem:[%s213 + $0xe0] sm:$0xff]
        %v277 = vld [vmem:[%s213 + $0xe8] sm:$0xff]
        %v278 = vld [vmem:[%s213 + $0xf0] sm:$0xff]
        %v279 = vld [vmem:[%s213 + $0xf8] sm:$0xff]
        %v280 = vld [vmem:[#allocation5] sm:$0xff]
        %v281 = vld [vmem:[#allocation5 + $0x8] sm:$0xff]
        %v282 = vld [vmem:[#allocation5 + $0x10] sm:$0xff]
        %v283 = vld [vmem:[#allocation5 + $0x18] sm:$0xff]
        %v284 = vld [vmem:[#allocation5 + $0x20] sm:$0xff]
        %v285 = vld [vmem:[#allocation5 + $0x28] sm:$0xff]
        %v286 = vld [vmem:[#allocation5 + $0x30] sm:$0xff]
        %v287 = vld [vmem:[#allocation5 + $0x38] sm:$0xff]
        %v288 = vld [vmem:[#allocation5 + $0x40] sm:$0xff]
        %v289 = vld [vmem:[#allocation5 + $0x48] sm:$0xff]
        %v290 = vld [vmem:[#allocation5 + $0x50] sm:$0xff]
        %v291 = vld [vmem:[#allocation5 + $0x58] sm:$0xff]
        %v292 = vld [vmem:[#allocation5 + $0x60] sm:$0xff]
        %v293 = vld [vmem:[#allocation5 + $0x68] sm:$0xff]
        %v294 = vld [vmem:[#allocation5 + $0x70] sm:$0xff]
        %v295 = vld [vmem:[#allocation5 + $0x78] sm:$0xff]
        %v296 = vld [vmem:[#allocation5 + $0x80] sm:$0xff]
        %v297 = vld [vmem:[#allocation5 + $0x88] sm:$0xff]
        %v298 = vld [vmem:[#allocation5 + $0x90] sm:$0xff]
        %v299 = vld [vmem:[#allocation5 + $0x98] sm:$0xff]
        %v300 = vld [vmem:[#allocation5 + $0xa0] sm:$0xff]
        %v301 = vld [vmem:[#allocation5 + $0xa8] sm:$0xff]
        %v302 = vld [vmem:[#allocation5 + $0xb0] sm:$0xff]
        %v303 = vld [vmem:[#allocation5 + $0xb8] sm:$0xff]
        %v304 = vld [vmem:[#allocation5 + $0xc0] sm:$0xff]
        %v305 = vld [vmem:[#allocation5 + $0xc8] sm:$0xff]
        %v306 = vld [vmem:[#allocation5 + $0xd0] sm:$0xff]
        %v307 = vld [vmem:[#allocation5 + $0xd8] sm:$0xff]
        %v308 = vld [vmem:[#allocation5 + $0xe0] sm:$0xff]
        %v309 = vld [vmem:[#allocation5 + $0xe8] sm:$0xff]
        %v310 = vld [vmem:[#allocation5 + $0xf0] sm:$0xff]
        %v311 = vld [vmem:[#allocation5 + $0xf8] sm:$0xff]
        %v312 = vld [vmem:[%s2] sm:$0x1]
        %v314 = vlaneseq
        %v315 = vshrl.u32 %v314, 7
        %v316 = vsub.s32 0, %v315
        %v317 = vrot.slane %v312, %v316
        %319 = vmatprep.subr.mxu0 0.0
        %320 = vmatpush1.msra.mxu0 %v295
        %321 = vmatprep.subr.mxu0 0.0
        %322 = vmatpush1.msra.mxu0 %v294
        %323 = vmatprep.subr.mxu0 0.0
        %324 = vmatpush1.msra.mxu0 %v293
        %325 = vmatprep.subr.mxu0 0.0
        %326 = vmatpush1.msra.mxu0 %v292
        %327 = vmatprep.subr.mxu0 0.0
        %328 = vmatpush1.msra.mxu0 %v291
        %329 = vmatprep.subr.mxu0 0.0
        %330 = vmatpush1.msra.mxu0 %v290
        %331 = vmatprep.subr.mxu0 0.0
        %332 = vmatpush1.msra.mxu0 %v289
        %333 = vmatprep.subr.mxu0 0.0
        %334 = vmatpush1.msra.mxu0 %v288
        %335 = vmatprep.subr.mxu0 0.0
        %336 = vmatpush1.msra.mxu0 %v287
        %337 = vmatprep.subr.mxu0 0.0
        %338 = vmatpush1.msra.mxu0 %v286
        %339 = vmatprep.subr.mxu0 0.0
        %340 = vmatpush1.msra.mxu0 %v285
        %341 = vmatprep.subr.mxu0 0.0
        %342 = vmatpush1.msra.mxu0 %v284
        %343 = vmatprep.subr.mxu0 0.0
        %344 = vmatpush1.msra.mxu0 %v283
        %345 = vmatprep.subr.mxu0 0.0
        %346 = vmatpush1.msra.mxu0 %v282
        %347 = vmatprep.subr.mxu0 0.0
        %348 = vmatpush1.msra.mxu0 %v281
        %349 = vmatprep.subr.mxu0 0.0
        %350 = vmatpush1.msra.mxu0 %v280
        %351 = vmatprep.subr.mxu0 0.0
        %352 = vmatpush2.msra.mxu0 %v311
        %353 = vmatprep.subr.mxu0 0.0
        %354 = vmatpush2.msra.mxu0 %v310
        %355 = vmatprep.subr.mxu0 0.0
        %356 = vmatpush2.msra.mxu0 %v309
        %357 = vmatprep.subr.mxu0 0.0
        %358 = vmatpush2.msra.mxu0 %v308
        %359 = vmatprep.subr.mxu0 0.0
        %360 = vmatpush2.msra.mxu0 %v307
        %361 = vmatprep.subr.mxu0 0.0
        %362 = vmatpush2.msra.mxu0 %v306
        %363 = vmatprep.subr.mxu0 0.0
        %364 = vmatpush2.msra.mxu0 %v305
        %365 = vmatprep.subr.mxu0 0.0
        %366 = vmatpush2.msra.mxu0 %v304
        %367 = vmatprep.subr.mxu0 0.0
        %368 = vmatpush2.msra.mxu0 %v303
        %369 = vmatprep.subr.mxu0 0.0
        %370 = vmatpush2.msra.mxu0 %v302
        %371 = vmatprep.subr.mxu0 0.0
        %372 = vmatpush2.msra.mxu0 %v301
        %373 = vmatprep.subr.mxu0 0.0
        %374 = vmatpush2.msra.mxu0 %v300
        %375 = vmatprep.subr.mxu0 0.0
        %376 = vmatpush2.msra.mxu0 %v299
        %377 = vmatprep.subr.mxu0 0.0
        %378 = vmatpush2.msra.mxu0 %v298
        %379 = vmatprep.subr.mxu0 0.0
        %380 = vmatpush2.msra.mxu0 %v297
        %381 = vmatprep.subr.mxu0 0.0
        %382 = vmatpush2.msra.mxu0 %v296
        %383 = vmatprep.mubr.f32.mxu0 %v249
        %384 = vmatmul.mubr.f32.gmra.mxu0 %v248
        %v385 = vpop.f32.mrf.mxu0
        %v386 = vadd.f32 %v317, %v385
        %v387 = vpop.f32.mrf.mxu0
        %388 = vmatprep.mubr.f32.mxu0 %v251
        %389 = vmatmul.mubr.f32.gmra.mxu0 %v250
        %v390 = vpop.f32.mrf.mxu0
        %v391 = vadd.f32 %v317, %v390
        %v392 = vpop.f32.mrf.mxu0
        %393 = vmatprep.mubr.f32.mxu0 %v253
        %394 = vmatmul.mubr.f32.gmra.mxu0 %v252
        %v395 = vpop.f32.mrf.mxu0
        %v396 = vadd.f32 %v317, %v395
        %v397 = vpop.f32.mrf.mxu0
        %398 = vmatprep.mubr.f32.mxu0 %v255
        %399 = vmatmul.mubr.f32.gmra.mxu0 %v254
        %v400 = vpop.f32.mrf.mxu0
        %v401 = vadd.f32 %v317, %v400
        %v402 = vpop.f32.mrf.mxu0
        %403 = vmatprep.mubr.f32.mxu0 %v257
        %404 = vmatmul.mubr.f32.gmra.mxu0 %v256
        %v405 = vpop.f32.mrf.mxu0
        %v406 = vadd.f32 %v317, %v405
        %v407 = vpop.f32.mrf.mxu0
        %408 = vmatprep.mubr.f32.mxu0 %v259
        %409 = vmatmul.mubr.f32.gmra.mxu0 %v258
        %v410 = vpop.f32.mrf.mxu0
        %v411 = vadd.f32 %v317, %v410
        %v412 = vpop.f32.mrf.mxu0
        %413 = vmatprep.mubr.f32.mxu0 %v261
        %414 = vmatmul.mubr.f32.gmra.mxu0 %v260
        %v415 = vpop.f32.mrf.mxu0
        %v416 = vadd.f32 %v317, %v415
        %v417 = vpop.f32.mrf.mxu0
        %418 = vmatprep.mubr.f32.mxu0 %v263
        %419 = vmatmul.mubr.f32.gmra.mxu0 %v262
        %v420 = vpop.f32.mrf.mxu0
        %v421 = vadd.f32 %v317, %v420
        %v422 = vpop.f32.mrf.mxu0
        %423 = vmatprep.mubr.f32.mxu0 %v265
        %424 = vmatmul.mubr.f32.gmra.mxu0 %v264
        %v425 = vpop.f32.mrf.mxu0
        %v426 = vadd.f32 %v317, %v425
        %v427 = vpop.f32.mrf.mxu0
        %428 = vmatprep.mubr.f32.mxu0 %v267
        %429 = vmatmul.mubr.f32.gmra.mxu0 %v266
        %v430 = vpop.f32.mrf.mxu0
        %v431 = vadd.f32 %v317, %v430
        %v432 = vpop.f32.mrf.mxu0
        %433 = vmatprep.mubr.f32.mxu0 %v269
        %434 = vmatmul.mubr.f32.gmra.mxu0 %v268
        %v435 = vpop.f32.mrf.mxu0
        %v436 = vadd.f32 %v317, %v435
        %v437 = vpop.f32.mrf.mxu0
        %438 = vmatprep.mubr.f32.mxu0 %v271
        %439 = vmatmul.mubr.f32.gmra.mxu0 %v270
        %v440 = vpop.f32.mrf.mxu0
        %v441 = vadd.f32 %v317, %v440
        %v442 = vpop.f32.mrf.mxu0
        %443 = vmatprep.mubr.f32.mxu0 %v273
        %444 = vmatmul.mubr.f32.gmra.mxu0 %v272
        %v445 = vpop.f32.mrf.mxu0
        %v446 = vadd.f32 %v317, %v445
        %v447 = vpop.f32.mrf.mxu0
        %448 = vmatprep.mubr.f32.mxu0 %v275
        %449 = vmatmul.mubr.f32.gmra.mxu0 %v274
        %v450 = vpop.f32.mrf.mxu0
        %v451 = vadd.f32 %v317, %v450
        %v452 = vpop.f32.mrf.mxu0
        %453 = vmatprep.mubr.f32.mxu0 %v277
        %454 = vmatmul.mubr.f32.gmra.mxu0 %v276
        %v455 = vpop.f32.mrf.mxu0
        %v456 = vadd.f32 %v317, %v455
        %v457 = vpop.f32.mrf.mxu0
        %458 = vmatprep.mubr.f32.mxu0 %v279
        %459 = vmatmul.mubr.f32.gmra.mxu0 %v278
        %v460 = vpop.f32.mrf.mxu0
        %v461 = vadd.f32 %v317, %v460
        %v462 = vpop.f32.mrf.mxu0
        %463 = vdwg.mxu0
        %v464 = vmax.f32 %v386, 0.0
        %v465 = vmax.f32 %v391, 0.0
        %v466 = vmax.f32 %v396, 0.0
        %v467 = vmax.f32 %v401, 0.0
        %v468 = vmax.f32 %v406, 0.0
        %v469 = vmax.f32 %v411, 0.0
        %v470 = vmax.f32 %v416, 0.0
        %v471 = vmax.f32 %v421, 0.0
        %v472 = vmax.f32 %v426, 0.0
        %v473 = vmax.f32 %v431, 0.0
        %v474 = vmax.f32 %v436, 0.0
        %v475 = vmax.f32 %v441, 0.0
        %v476 = vmax.f32 %v446, 0.0
        %v477 = vmax.f32 %v451, 0.0
        %v478 = vmax.f32 %v456, 0.0
        %v479 = vmax.f32 %v461, 0.0
        %v480 = vld [vmem:[#allocation7] sm:$0xff]
        %v481 = vld [vmem:[#allocation7 + $0x8] sm:$0xff]
        %v482 = vld [vmem:[#allocation7 + $0x10] sm:$0xff]
        %v483 = vld [vmem:[#allocation7 + $0x18] sm:$0xff]
        %v484 = vld [vmem:[#allocation7 + $0x20] sm:$0xff]
        %v485 = vld [vmem:[#allocation7 + $0x28] sm:$0xff]
        %v486 = vld [vmem:[#allocation7 + $0x30] sm:$0xff]
        %v487 = vld [vmem:[#allocation7 + $0x38] sm:$0xff]
        %v488 = vld [vmem:[#allocation7 + $0x40] sm:$0xff]
        %v489 = vld [vmem:[#allocation7 + $0x48] sm:$0xff]
        %v490 = vld [vmem:[#allocation7 + $0x50] sm:$0xff]
        %v491 = vld [vmem:[#allocation7 + $0x58] sm:$0xff]
        %v492 = vld [vmem:[#allocation7 + $0x60] sm:$0xff]
        %v493 = vld [vmem:[#allocation7 + $0x68] sm:$0xff]
        %v494 = vld [vmem:[#allocation7 + $0x70] sm:$0xff]
        %v495 = vld [vmem:[#allocation7 + $0x78] sm:$0xff]
        %496 = vmatprep.subr.mxu0 0.0
        %497 = vmatpush1.msra.mxu0 %v495
        %498 = vmatprep.subr.mxu0 0.0
        %499 = vmatpush1.msra.mxu0 %v494
        %500 = vmatprep.subr.mxu0 0.0
        %501 = vmatpush1.msra.mxu0 %v493
        %502 = vmatprep.subr.mxu0 0.0
        %503 = vmatpush1.msra.mxu0 %v492
        %504 = vmatprep.subr.mxu0 0.0
        %505 = vmatpush1.msra.mxu0 %v491
        %506 = vmatprep.subr.mxu0 0.0
        %507 = vmatpush1.msra.mxu0 %v490
        %508 = vmatprep.subr.mxu0 0.0
        %509 = vmatpush1.msra.mxu0 %v489
        %510 = vmatprep.subr.mxu0 0.0
        %511 = vmatpush1.msra.mxu0 %v488
        %512 = vmatprep.subr.mxu0 0.0
        %513 = vmatpush1.msra.mxu0 %v487
        %514 = vmatprep.subr.mxu0 0.0
        %515 = vmatpush1.msra.mxu0 %v486
        %516 = vmatprep.subr.mxu0 0.0
        %517 = vmatpush1.msra.mxu0 %v485
        %518 = vmatprep.subr.mxu0 0.0
        %519 = vmatpush1.msra.mxu0 %v484
        %520 = vmatprep.subr.mxu0 0.0
        %521 = vmatpush1.msra.mxu0 %v483
        %522 = vmatprep.subr.mxu0 0.0
        %523 = vmatpush1.msra.mxu0 %v482
        %524 = vmatprep.subr.mxu0 0.0
        %525 = vmatpush1.msra.mxu0 %v481
        %526 = vmatprep.subr.mxu0 0.0
        %527 = vmatpush1.msra.mxu0 %v480
        %528 = vmatprep.subr.mxu0 0.0
        %529 = vmatpush2.msra.mxu0 0.0
        %530 = vmatprep.subr.mxu0 0.0
        %531 = vmatpush2.msra.mxu0 0.0
        %532 = vmatprep.subr.mxu0 0.0
        %533 = vmatpush2.msra.mxu0 0.0
        %534 = vmatprep.subr.mxu0 0.0
        %535 = vmatpush2.msra.mxu0 0.0
        %536 = vmatprep.subr.mxu0 0.0
        %537 = vmatpush2.msra.mxu0 0.0
        %538 = vmatprep.subr.mxu0 0.0
        %539 = vmatpush2.msra.mxu0 0.0
        %540 = vmatprep.subr.mxu0 0.0
        %541 = vmatpush2.msra.mxu0 0.0
        %542 = vmatprep.subr.mxu0 0.0
        %543 = vmatpush2.msra.mxu0 0.0
        %544 = vmatprep.subr.mxu0 0.0
        %545 = vmatpush2.msra.mxu0 0.0
        %546 = vmatprep.subr.mxu0 0.0
        %547 = vmatpush2.msra.mxu0 0.0
        %548 = vmatprep.subr.mxu0 0.0
        %549 = vmatpush2.msra.mxu0 0.0
        %550 = vmatprep.subr.mxu0 0.0
        %551 = vmatpush2.msra.mxu0 0.0
        %552 = vmatprep.subr.mxu0 0.0
        %553 = vmatpush2.msra.mxu0 0.0
        %554 = vmatprep.subr.mxu0 0.0
        %555 = vmatpush2.msra.mxu0 0.0
        %556 = vmatprep.subr.mxu0 0.0
        %557 = vmatpush2.msra.mxu0 0.0
        %558 = vmatprep.subr.mxu0 0.0
        %559 = vmatpush2.msra.mxu0 0.0
        %560 = vmatprep.mubr.f32.mxu0 0.0
        %561 = vmatmul.mubr.f32.gmra.mxu0 %v464
        %v562 = vpop.f32.mrf.mxu0
        %v563 = vadd.f32 0.0, %v562
        %v564 = vpop.f32.mrf.mxu0
        %565 = vmatprep.mubr.f32.mxu0 0.0
        %566 = vmatmul.mubr.f32.gmra.mxu0 %v465
        %v567 = vpop.f32.mrf.mxu0
        %v568 = vadd.f32 0.0, %v567
        %v569 = vpop.f32.mrf.mxu0
        %570 = vmatprep.mubr.f32.mxu0 0.0
        %571 = vmatmul.mubr.f32.gmra.mxu0 %v466
        %v572 = vpop.f32.mrf.mxu0
        %v573 = vadd.f32 0.0, %v572
        %v574 = vpop.f32.mrf.mxu0
        %575 = vmatprep.mubr.f32.mxu0 0.0
        %576 = vmatmul.mubr.f32.gmra.mxu0 %v467
        %v577 = vpop.f32.mrf.mxu0
        %v578 = vadd.f32 0.0, %v577
        %v579 = vpop.f32.mrf.mxu0
        %580 = vmatprep.mubr.f32.mxu0 0.0
        %581 = vmatmul.mubr.f32.gmra.mxu0 %v468
        %v582 = vpop.f32.mrf.mxu0
        %v583 = vadd.f32 0.0, %v582
        %v584 = vpop.f32.mrf.mxu0
        %585 = vmatprep.mubr.f32.mxu0 0.0
        %586 = vmatmul.mubr.f32.gmra.mxu0 %v469
        %v587 = vpop.f32.mrf.mxu0
        %v588 = vadd.f32 0.0, %v587
        %v589 = vpop.f32.mrf.mxu0
        %590 = vmatprep.mubr.f32.mxu0 0.0
        %591 = vmatmul.mubr.f32.gmra.mxu0 %v470
        %v592 = vpop.f32.mrf.mxu0
        %v593 = vadd.f32 0.0, %v592
        %v594 = vpop.f32.mrf.mxu0
        %595 = vmatprep.mubr.f32.mxu0 0.0
        %596 = vmatmul.mubr.f32.gmra.mxu0 %v471
        %v597 = vpop.f32.mrf.mxu0
        %v598 = vadd.f32 0.0, %v597
        %v599 = vpop.f32.mrf.mxu0
        %600 = vmatprep.mubr.f32.mxu0 0.0
        %601 = vmatmul.mubr.f32.gmra.mxu0 %v472
        %v602 = vpop.f32.mrf.mxu0
        %v603 = vadd.f32 0.0, %v602
        %v604 = vpop.f32.mrf.mxu0
        %605 = vmatprep.mubr.f32.mxu0 0.0
        %606 = vmatmul.mubr.f32.gmra.mxu0 %v473
        %v607 = vpop.f32.mrf.mxu0
        %v608 = vadd.f32 0.0, %v607
        %v609 = vpop.f32.mrf.mxu0
        %610 = vmatprep.mubr.f32.mxu0 0.0
        %611 = vmatmul.mubr.f32.gmra.mxu0 %v474
        %v612 = vpop.f32.mrf.mxu0
        %v613 = vadd.f32 0.0, %v612
        %v614 = vpop.f32.mrf.mxu0
        %615 = vmatprep.mubr.f32.mxu0 0.0
        %616 = vmatmul.mubr.f32.gmra.mxu0 %v475
        %v617 = vpop.f32.mrf.mxu0
        %v618 = vadd.f32 0.0, %v617
        %v619 = vpop.f32.mrf.mxu0
        %620 = vmatprep.mubr.f32.mxu0 0.0
        %621 = vmatmul.mubr.f32.gmra.mxu0 %v476
        %v622 = vpop.f32.mrf.mxu0
        %v623 = vadd.f32 0.0, %v622
        %v624 = vpop.f32.mrf.mxu0
        %625 = vmatprep.mubr.f32.mxu0 0.0
        %626 = vmatmul.mubr.f32.gmra.mxu0 %v477
        %v627 = vpop.f32.mrf.mxu0
        %v628 = vadd.f32 0.0, %v627
        %v629 = vpop.f32.mrf.mxu0
        %630 = vmatprep.mubr.f32.mxu0 0.0
        %631 = vmatmul.mubr.f32.gmra.mxu0 %v478
        %v632 = vpop.f32.mrf.mxu0
        %v633 = vadd.f32 0.0, %v632
        %v634 = vpop.f32.mrf.mxu0
        %635 = vmatprep.mubr.f32.mxu0 0.0
        %636 = vmatmul.mubr.f32.gmra.mxu0 %v479
        %v637 = vpop.f32.mrf.mxu0
        %v638 = vadd.f32 0.0, %v637
        %v639 = vpop.f32.mrf.mxu0
        %640 = vdwg.mxu0
        %641 = vst [vmem:[%s245] sm:$0xff] %v563
        %642 = vst [vmem:[%s245 + $0x8] sm:$0xff] %v568
        %643 = vst [vmem:[%s245 + $0x10] sm:$0xff] %v573
        %644 = vst [vmem:[%s245 + $0x18] sm:$0xff] %v578
        %645 = vst [vmem:[%s245 + $0x20] sm:$0xff] %v583
        %646 = vst [vmem:[%s245 + $0x28] sm:$0xff] %v588
        %647 = vst [vmem:[%s245 + $0x30] sm:$0xff] %v593
        %648 = vst [vmem:[%s245 + $0x38] sm:$0xff] %v598
        %649 = vst [vmem:[%s245 + $0x40] sm:$0xff] %v603
        %650 = vst [vmem:[%s245 + $0x48] sm:$0xff] %v608
        %651 = vst [vmem:[%s245 + $0x50] sm:$0xff] %v613
        %652 = vst [vmem:[%s245 + $0x58] sm:$0xff] %v618
        %653 = vst [vmem:[%s245 + $0x60] sm:$0xff] %v623
        %654 = vst [vmem:[%s245 + $0x68] sm:$0xff] %v628
        %655 = vst [vmem:[%s245 + $0x70] sm:$0xff] %v633
        %656 = vst [vmem:[%s245 + $0x78] sm:$0xff] %v638
        %s657 = sand.u32 %s119, 1
        %s658 = scalar_lea.sflag [#allocation4], %s657
        %s659 = sand.u32 %s119, 1
        %s660 = smul.addr %s659, 128
        %s661 = scalar_lea.vmem [#allocation8], %s660
        // Predicated region
        $region49: #{tpu_custom_call.1} parent=35 // pred_check
          %p662 = pneg %p129
        $region50: #{tpu_custom_call.1} parent=35 // pred_check_branch
          %664 = sbr.rel (%p662) target = $region52
        $region51: #{tpu_custom_call.1} parent=35 // pred_region
          %s665 = smul.u32 16, %s22
          %s667 = ssub.s32 2048, 2048
          %668 = vsyncadd %s658, %s667
          %s669 = smul.addr %s665, 128
          %s670 = scalar_lea.hbm %s4, %s669
          %s671 = sshll.u32 %s661, 4
          %s672 = int_to_ptr.vmem [resolvable:$true] %s671
          %677 = dma.vmem_to_hbm [thread:$0]  %s672, 2048, %s670, %s658, 128, 128, 8
        $region52: #{tpu_custom_call.1} parent=35 // pred_fallthru
          _
      $region36: #{tpu_custom_call.1} parent=5 // pred_fallthru
        _
      %p678 = scmp.le.s32.totalorder 2, %s17
      // Predicated region
      $region53: #{tpu_custom_call.1} parent=5 // pred_check
        %p679 = pneg %p678
      $region54: #{tpu_custom_call.1} parent=5 // pred_check_branch
        %681 = sbr.rel (%p679) target = $region56
      $region55: #{tpu_custom_call.1} parent=5 // pred_region
        %s682 = ssub.s32 %s17, 2
        // Predicated region
        $region57: #{tpu_custom_call.1} parent=55 // pred_check
          %p683 = pneg %p135
        $region58: #{tpu_custom_call.1} parent=55 // pred_check_branch
          %685 = sbr.rel (%p683) target = $region60
        $region59: #{tpu_custom_call.1} parent=55 // pred_region
          %s686 = sand.u32 %s120, 1
          %s687 = scalar_lea.sflag [#allocation4], %s686
          %s688 = sand.u32 %s120, 1
          %s689 = smul.addr %s688, 128
          %s690 = scalar_lea.vmem [#allocation8], %s689
          %691 = dma.done %s687, 2048
        $region60: #{tpu_custom_call.1} parent=55 // pred_fallthru
          _
      $region56: #{tpu_custom_call.1} parent=5 // pred_fallthru
        _
    $region6: #{tpu_custom_call.1} parent=1 // loop_footer
      %s21 = sadd.s32 1, %s17
    $region7: #{tpu_custom_call.1} parent=1 // loop_footer_branch
      %16 = sbr.rel target = $region3
    $region8: #{tpu_custom_call.1} parent=1 // loop_exit
      _
    %692 = vsyncpa [#allocation3], 1
    %s693 = scalar_lea.sflag [#allocation3], 1
    %694 = vsyncpa %s693, 1
    %695 = vsyncpa [#allocation6], 1
    %696 = vsyncpa [#allocation4], 1
    %s697 = scalar_lea.sflag [#allocation4], 1
    %698 = vsyncpa %s697, 1

// kernel: tpu_custom_call.1
$region0: #{tpu_custom_call.1}
  #allocation0 [shape = 'u32[]', space=smem, size = 0x4, offset = 0x4, fixed_abs, tag = 'smem constant byte address 0x4 - core index']
  #allocation1 [shape = 'u32[144,128]{1,0:T(1,128)}', space=vmem, size = 0x12000, scoped, tag = 'internal scratch']
  %s0 = inlined_call_operand.hbm [shape: f32[384,256], index: 0, kind: input, shape index: {}]
  %s1 = inlined_call_operand.hbm [shape: f32[256,128], index: 1, kind: input, shape index: {}]
  %s2 = inlined_call_operand.vmem [shape: f32[1,128], index: 2, kind: input, shape index: {}]
  %s3 = inlined_call_operand.hbm [shape: f32[128,128], index: 3, kind: input, shape index: {}]
  %s4 = inlined_call_operand.hbm [shape: f32[384,128], index: 4, kind: output, shape index: {}]
  %s5 = sld [smem:[#allocation0]]
  $region61: #{tpu_custom_call.1} parent=0
    _
  %s7 = ssub.s32 1, %s5
  %s8 = scalar_select 0, %s7, %s5
  $region1: #{tpu_custom_call.1} parent=0
    #allocation2 [shape = 'u8[262144]{0}', space=vmem, size = 0x40000, scoped, tag = 'input window, operand 0']
    #allocation3 [shape = 's32[2]{0}', space=sflag, size = 0x8, scoped, tag = 'scoped memory for tpu_custom_call.1']
    #allocation4 [shape = 's32[2]{0}', space=sflag, size = 0x8, scoped, tag = 'scoped memory for tpu_custom_call.1']
    #allocation5 [shape = 'u8[131072]{0}', space=vmem, size = 0x20000, scoped, tag = 'input window, operand 1, single buffered']
    #allocation6 [shape = 's32[1]{0}', space=sflag, size = 0x4, scoped, tag = 'scoped memory for tpu_custom_call.1']
    #allocation7 [shape = 'u8[65536]{0}', space=vmem, size = 0x10000, scoped, tag = 'input window, operand 3, single buffered']
    #allocation8 [shape = 'u8[131072]{0}', space=vmem, size = 0x20000, scoped, tag = 'output window, operand 0']
    %9 = vsyncpa [#allocation3], 0
    %s10 = scalar_lea.sflag [#allocation3], 1
    %11 = vsyncpa %s10, 0
    %12 = vsyncpa [#allocation6], 0
    %13 = vsyncpa [#allocation4], 0
    %s14 = scalar_lea.sflag [#allocation4], 1
    %15 = vsyncpa %s14, 0
    loop: start=0, step=1, limit=5
    $region2: #{tpu_custom_call.1} parent=1 // loop_pre_header
      _
    $region3: #{tpu_custom_call.1} parent=1 // loop_header
      %s17 = sphi 0, %s21
      %p18 = scmp.ge.s32.totalorder %s17, 5
      %s27 = sphi 0, %s29
      %s30 = sphi 0, %s27
      %s31 = sphi 0, %s30
      %s47 = sphi 0, %s31
      %s51 = sphi 0, %s51
      %s53 = sphi 0, %s51
      %s54 = sphi 0, %s53
      %s68 = sphi 0, %s54
      %s72 = sphi 0, %s72
      %s74 = sphi 0, %s72
      %s75 = sphi 0, %s74
      %s89 = sphi 0, %s75
      %s93 = sphi 0, %s93
      %s95 = sphi 0, %s93
      %s96 = sphi 0, %s95
      %s110 = sphi 0, %s96
      %s116 = sphi 0, %s118
      %s119 = sphi 0, %s116
      %s120 = sphi 0, %s119
      %s136 = sphi 0, %s120
    $region4: #{tpu_custom_call.1} parent=1 // loop_header_branch
      %20 = sbr.rel (%p18) target = $region8
    $region5: #{tpu_custom_call.1} parent=1 // loop_body
      %s22 = ssub.s32 %s17, 1
      %s23 = ssub.s32 %s17, 2
      %s24 = sadd.s32 %s17, 1
      %s25 = ssub.s32 %s17, %s24
      %p26 = scmp.eq.s32.totalorder %s25, 0
      %s28 = sadd.s32 %s27, 1
      %s29 = scalar_select %p26, %s27, %s28
      %p32 = pneg %p26
      %p33 = scmp.eq.s32.totalorder %s17, 2
      %p34 = por %p32, %p33
      %p35 = scmp.ne.s32.totalorder %s27, %s30
      %p36 = scmp.eq.s32.totalorder %s17, 0
      %p37 = por %p35, %p36
      %p38 = scmp.ne.s32.totalorder %s27, %s30
      %p39 = scmp.eq.s32.totalorder %s22, 2
      %p40 = por %p38, %p39
      %p41 = scmp.ne.s32.totalorder %s30, %s31
      %p42 = scmp.eq.s32.totalorder %s22, 0
      %p43 = por %p41, %p42
      %p44 = scmp.ne.s32.totalorder %s30, %s31
      %p45 = scmp.eq.s32.totalorder %s23, 2
      %p46 = por %p44, %p45
      %p48 = scmp.ne.s32.totalorder %s31, %s47
      %p49 = scmp.eq.s32.totalorder %s23, 0
      %p50 = por %p48, %p49
      %s52 = sadd.s32 %s51, 1
      %p55 = scmp.eq.s32.totalorder %s17, 2
      %p56 = scmp.ne.s32.totalorder %s51, %s53
      %p57 = scmp.eq.s32.totalorder %s17, 0
      %p58 = por %p56, %p57
      %p59 = scmp.ne.s32.totalorder %s51, %s53
      %p60 = scmp.eq.s32.totalorder %s22, 2
      %p61 = por %p59, %p60
      %p62 = scmp.ne.s32.totalorder %s53, %s54
      %p63 = scmp.eq.s32.totalorder %s22, 0
      %p64 = por %p62, %p63
      %p65 = scmp.ne.s32.totalorder %s53, %s54
      %p66 = scmp.eq.s32.totalorder %s23, 2
      %p67 = por %p65, %p66
      %p69 = scmp.ne.s32.totalorder %s54, %s68
      %p70 = scmp.eq.s32.totalorder %s23, 0
      %p71 = por %p69, %p70
      %s73 = sadd.s32 %s72, 1
      %p76 = scmp.eq.s32.totalorder %s17, 2
      %p77 = scmp.ne.s32.totalorder %s72, %s74
      %p78 = scmp.eq.s32.totalorder %s17, 0
      %p79 = por %p77, %p78
      %p80 = scmp.ne.s32.totalorder %s72, %s74
      %p81 = scmp.eq.s32.totalorder %s22, 2
      %p82 = por %p80, %p81
      %p83 = scmp.ne.s32.totalorder %s74, %s75
      %p84 = scmp.eq.s32.totalorder %s22, 0
      %p85 = por %p83, %p84
      %p86 = scmp.ne.s32.totalorder %s74, %s75
      %p87 = scmp.eq.s32.totalorder %s23, 2
      %p88 = por %p86, %p87
      %p90 = scmp.ne.s32.totalorder %s75, %s89
      %p91 = scmp.eq.s32.totalorder %s23, 0
      %p92 = por %p90, %p91
      %s94 = sadd.s32 %s93, 1
      %p97 = scmp.eq.s32.totalorder %s17, 2
      %p98 = scmp.ne.s32.totalorder %s93, %s95
      %p99 = scmp.eq.s32.totalorder %s17, 0
      %p100 = por %p98, %p99
      %p101 = scmp.ne.s32.totalorder %s93, %s95
      %p102 = scmp.eq.s32.totalorder %s22, 2
      %p103 = por %p101, %p102
      %p104 = scmp.ne.s32.totalorder %s95, %s96
      %p105 = scmp.eq.s32.totalorder %s22, 0
      %p106 = por %p104, %p105
      %p107 = scmp.ne.s32.totalorder %s95, %s96
      %p108 = scmp.eq.s32.totalorder %s23, 2
      %p109 = por %p107, %p108
      %p111 = scmp.ne.s32.totalorder %s96, %s110
      %p112 = scmp.eq.s32.totalorder %s23, 0
      %p113 = por %p111, %p112
      %s114 = ssub.s32 %s17, %s24
      %p115 = scmp.eq.s32.totalorder %s114, 0
      %s117 = sadd.s32 %s116, 1
      %s118 = scalar_select %p115, %s116, %s117
      %p121 = pneg %p115
      %p122 = scmp.eq.s32.totalorder %s17, 2
      %p123 = por %p121, %p122
      %p124 = scmp.ne.s32.totalorder %s116, %s119
      %p125 = scmp.eq.s32.totalorder %s17, 0
      %p126 = por %p124, %p125
      %p127 = scmp.ne.s32.totalorder %s116, %s119
      %p128 = scmp.eq.s32.totalorder %s22, 2
      %p129 = por %p127, %p128
      %p130 = scmp.ne.s32.totalorder %s119, %s120
      %p131 = scmp.eq.s32.totalorder %s22, 0
      %p132 = por %p130, %p131
      %p133 = scmp.ne.s32.totalorder %s119, %s120
      %p134 = scmp.eq.s32.totalorder %s23, 2
      %p135 = por %p133, %p134
      %p137 = scmp.ne.s32.totalorder %s120, %s136
      %p138 = scmp.eq.s32.totalorder %s23, 0
      %p139 = por %p137, %p138
      %p140 = scmp.le.s32.totalorder 1, %s17
      %p141 = scmp.lt.s32.totalorder %s17, 4
      %p142 = pnand %p140, %p141
      %p143 = pneg %p142
      // Predicated region
      $region9: #{tpu_custom_call.1} parent=5 // pred_check
        _
      $region10: #{tpu_custom_call.1} parent=5 // pred_check_branch
        %145 = sbr.rel (%p142) target = $region12
      $region11: #{tpu_custom_call.1} parent=5 // pred_region
        %s146 = ssub.s32 %s17, 1
        // Predicated region
        $region13: #{tpu_custom_call.1} parent=11 // pred_check
          %p147 = pneg %p64
        $region14: #{tpu_custom_call.1} parent=11 // pred_check_branch
          %149 = sbr.rel (%p147) target = $region16
        $region15: #{tpu_custom_call.1} parent=11 // pred_region
          %s151 = ssub.s32 4096, 4096
          %152 = vsyncadd [#allocation6], %s151
          %s153 = sshll.u32 [#allocation5], 4
          %s154 = int_to_ptr.vmem [resolvable:$true] %s153
          %159 = dma.hbm_to_vmem [thread:$0]  %s1, 4096, %s154, [#allocation6], 128, 128, 8
        $region16: #{tpu_custom_call.1} parent=11 // pred_fallthru
          _
        // Predicated region
        $region17: #{tpu_custom_call.1} parent=11 // pred_check
          %p160 = pneg %p85
        $region18: #{tpu_custom_call.1} parent=11 // pred_check_branch
          %162 = sbr.rel (%p160) target = $region20
        $region19: #{tpu_custom_call.1} parent=11 // pred_region
          _
        $region20: #{tpu_custom_call.1} parent=11 // pred_fallthru
          _
        // Predicated region
        $region21: #{tpu_custom_call.1} parent=11 // pred_check
          %p163 = pneg %p106
        $region22: #{tpu_custom_call.1} parent=11 // pred_check_branch
          %165 = sbr.rel (%p163) target = $region24
        $region23: #{tpu_custom_call.1} parent=11 // pred_region
          %s167 = ssub.s32 2048, 2048
          %168 = vsyncadd [#allocation6], %s167
          %s169 = sshll.u32 [#allocation7], 4
          %s170 = int_to_ptr.vmem [resolvable:$true] %s169
          %175 = dma.hbm_to_vmem [thread:$0]  %s3, 2048, %s170, [#allocation6], 128, 128, 8
        $region24: #{tpu_custom_call.1} parent=11 // pred_fallthru
          _
      $region12: #{tpu_custom_call.1} parent=5 // pred_fallthru
        _
      %p176 = scmp.lt.s32.totalorder %s17, 3
      // Predicated region
      $region25: #{tpu_custom_call.1} parent=5 // pred_check
        %p177 = pneg %p176
      $region26: #{tpu_custom_call.1} parent=5 // pred_check_branch
        %179 = sbr.rel (%p177) target = $region28
      $region27: #{tpu_custom_call.1} parent=5 // pred_region
        // Predicated region
        $region29: #{tpu_custom_call.1} parent=27 // pred_check
          %p180 = pneg %p37
        $region30: #{tpu_custom_call.1} parent=27 // pred_check_branch
          %182 = sbr.rel (%p180) target = $region32
        $region31: #{tpu_custom_call.1} parent=27 // pred_region
          %s183 = sand.u32 %s27, 1
          %s184 = scalar_lea.sflag [#allocation3], %s183
          %s185 = sand.u32 %s27, 1
          %s186 = smul.addr %s185, 256
          %s187 = scalar_lea.vmem [#allocation2], %s186
          %s188 = smul.u32 16, %s17
          %s190 = ssub.s32 4096, 4096
          %191 = vsyncadd %s184, %s190
          %s192 = smul.addr %s188, 2
          %s193 = smul.addr %s192, 128
          %s194 = scalar_lea.hbm %s0, %s193
          %s195 = sshll.u32 %s187, 4
          %s196 = int_to_ptr.vmem [resolvable:$true] %s195
          %201 = dma.hbm_to_vmem [thread:$0]  %s194, 4096, %s196, %s184, 256, 256, 16
        $region32: #{tpu_custom_call.1} parent=27 // pred_fallthru
          _
      $region28: #{tpu_custom_call.1} parent=5 // pred_fallthru
        _
      %p202 = scmp.le.s32.totalorder 1, %s17
      %p203 = scmp.lt.s32.totalorder %s17, 4
      %p204 = pnand %p202, %p203
      %p205 = pneg %p204
      // Predicated region
      $region33: #{tpu_custom_call.1} parent=5 // pred_check
        _
      $region34: #{tpu_custom_call.1} parent=5 // pred_check_branch
        %207 = sbr.rel (%p204) target = $region36
      $region35: #{tpu_custom_call.1} parent=5 // pred_region
        %s208 = ssub.s32 %s17, 1
        %s209 = sand.u32 %s30, 1
        %s210 = scalar_lea.sflag [#allocation3], %s209
        %s211 = sand.u32 %s30, 1
        %s212 = smul.addr %s211, 256
        %s213 = scalar_lea.vmem [#allocation2], %s212
        // Predicated region
        $region37: #{tpu_custom_call.1} parent=35 // pred_check
          %p214 = pneg %p43
        $region38: #{tpu_custom_call.1} parent=35 // pred_check_branch
          %216 = sbr.rel (%p214) target = $region40
        $region39: #{tpu_custom_call.1} parent=35 // pred_region
          %217 = dma.done %s210, 4096
        $region40: #{tpu_custom_call.1} parent=35 // pred_fallthru
          _
        // Predicated region
        $region41: #{tpu_custom_call.1} parent=35 // pred_check
          %p218 = pneg %p64
        $region42: #{tpu_custom_call.1} parent=35 // pred_check_branch
          %220 = sbr.rel (%p218) target = $region44
        $region43: #{tpu_custom_call.1} parent=35 // pred_region
          %221 = dma.done [#allocation6], 4096
        $region44: #{tpu_custom_call.1} parent=35 // pred_fallthru
          _
        // Predicated region
        $region45: #{tpu_custom_call.1} parent=35 // pred_check
          %p222 = pneg %p106
        $region46: #{tpu_custom_call.1} parent=35 // pred_check_branch
          %224 = sbr.rel (%p222) target = $region48
        $region47: #{tpu_custom_call.1} parent=35 // pred_region
          %225 = dma.done [#allocation6], 2048
        $region48: #{tpu_custom_call.1} parent=35 // pred_fallthru
          _
        %s226 = sand.u32 %s30, 1
        %s227 = scalar_lea.sflag [#allocation3], %s226
        %s228 = sand.u32 %s30, 1
        %s229 = smul.addr %s228, 256
        %s230 = scalar_lea.vmem [#allocation2], %s229
        %p231 = pneg %p43
        %p232 = pneg %p40
        %p233 = pneg %p64
        %p234 = pneg %p61
        %p235 = pneg %p85
        %p236 = pneg %p82
        %p237 = pneg %p106
        %p238 = pneg %p103
        %p239 = pneg %p132
        %p240 = pneg %p129
        %s241 = sand.u32 %s119, 1
        %s242 = scalar_lea.sflag [#allocation4], %s241
        %s243 = sand.u32 %s119, 1
        %s244 = smul.addr %s243, 128
        %s245 = scalar_lea.vmem [#allocation8], %s244
        %s246 = smul.u32 16, %s22
        %s247 = smul.u32 16, %s22
        %v248 = vld [vmem:[%s213] sm:$0xff]
        %v249 = vld [vmem:[%s213 + $0x8] sm:$0xff]
        %v250 = vld [vmem:[%s213 + $0x10] sm:$0xff]
        %v251 = vld [vmem:[%s213 + $0x18] sm:$0xff]
        %v252 = vld [vmem:[%s213 + $0x20] sm:$0xff]
        %v253 = vld [vmem:[%s213 + $0x28] sm:$0xff]
        %v254 = vld [vmem:[%s213 + $0x30] sm:$0xff]
        %v255 = vld [vmem:[%s213 + $0x38] sm:$0xff]
        %v256 = vld [vmem:[%s213 + $0x40] sm:$0xff]
        %v257 = vld [vmem:[%s213 + $0x48] sm:$0xff]
        %v258 = vld [vmem:[%s213 + $0x50] sm:$0xff]
        %v259 = vld [vmem:[%s213 + $0x58] sm:$0xff]
        %v260 = vld [vmem:[%s213 + $0x60] sm:$0xff]
        %v261 = vld [vmem:[%s213 + $0x68] sm:$0xff]
        %v262 = vld [vmem:[%s213 + $0x70] sm:$0xff]
        %v263 = vld [vmem:[%s213 + $0x78] sm:$0xff]
        %v264 = vld [vmem:[%s213 + $0x80] sm:$0xff]
        %v265 = vld [vmem:[%s213 + $0x88] sm:$0xff]
        %v266 = vld [vmem:[%s213 + $0x90] sm:$0xff]
        %v267 = vld [vmem:[%s213 + $0x98] sm:$0xff]
        %v268 = vld [vmem:[%s213 + $0xa0] sm:$0xff]
        %v269 = vld [vmem:[%s213 + $0xa8] sm:$0xff]
        %v270 = vld [vmem:[%s213 + $0xb0] sm:$0xff]
        %v271 = vld [vmem:[%s213 + $0xb8] sm:$0xff]
        %v272 = vld [vmem:[%s213 + $0xc0] sm:$0xff]
        %v273 = vld [vmem:[%s213 + $0xc8] sm:$0xff]
        %v274 = vld [vmem:[%s213 + $0xd0] sm:$0xff]
        %v275 = vld [vmem:[%s213 + $0xd8] sm:$0xff]
        %v276 = vld [vmem:[%s213 + $0xe0] sm:$0xff]
        %v277 = vld [vmem:[%s213 + $0xe8] sm:$0xff]
        %v278 = vld [vmem:[%s213 + $0xf0] sm:$0xff]
        %v279 = vld [vmem:[%s213 + $0xf8] sm:$0xff]
        %v280 = vld [vmem:[#allocation5] sm:$0xff]
        %v281 = vld [vmem:[#allocation5 + $0x8] sm:$0xff]
        %v282 = vld [vmem:[#allocation5 + $0x10] sm:$0xff]
        %v283 = vld [vmem:[#allocation5 + $0x18] sm:$0xff]
        %v284 = vld [vmem:[#allocation5 + $0x20] sm:$0xff]
        %v285 = vld [vmem:[#allocation5 + $0x28] sm:$0xff]
        %v286 = vld [vmem:[#allocation5 + $0x30] sm:$0xff]
        %v287 = vld [vmem:[#allocation5 + $0x38] sm:$0xff]
        %v288 = vld [vmem:[#allocation5 + $0x40] sm:$0xff]
        %v289 = vld [vmem:[#allocation5 + $0x48] sm:$0xff]
        %v290 = vld [vmem:[#allocation5 + $0x50] sm:$0xff]
        %v291 = vld [vmem:[#allocation5 + $0x58] sm:$0xff]
        %v292 = vld [vmem:[#allocation5 + $0x60] sm:$0xff]
        %v293 = vld [vmem:[#allocation5 + $0x68] sm:$0xff]
        %v294 = vld [vmem:[#allocation5 + $0x70] sm:$0xff]
        %v295 = vld [vmem:[#allocation5 + $0x78] sm:$0xff]
        %v296 = vld [vmem:[#allocation5 + $0x80] sm:$0xff]
        %v297 = vld [vmem:[#allocation5 + $0x88] sm:$0xff]
        %v298 = vld [vmem:[#allocation5 + $0x90] sm:$0xff]
        %v299 = vld [vmem:[#allocation5 + $0x98] sm:$0xff]
        %v300 = vld [vmem:[#allocation5 + $0xa0] sm:$0xff]
        %v301 = vld [vmem:[#allocation5 + $0xa8] sm:$0xff]
        %v302 = vld [vmem:[#allocation5 + $0xb0] sm:$0xff]
        %v303 = vld [vmem:[#allocation5 + $0xb8] sm:$0xff]
        %v304 = vld [vmem:[#allocation5 + $0xc0] sm:$0xff]
        %v305 = vld [vmem:[#allocation5 + $0xc8] sm:$0xff]
        %v306 = vld [vmem:[#allocation5 + $0xd0] sm:$0xff]
        %v307 = vld [vmem:[#allocation5 + $0xd8] sm:$0xff]
        %v308 = vld [vmem:[#allocation5 + $0xe0] sm:$0xff]
        %v309 = vld [vmem:[#allocation5 + $0xe8] sm:$0xff]
        %v310 = vld [vmem:[#allocation5 + $0xf0] sm:$0xff]
        %v311 = vld [vmem:[#allocation5 + $0xf8] sm:$0xff]
        %v312 = vld [vmem:[%s2] sm:$0x1]
        %v314 = vlaneseq
        %v315 = vshrl.u32 %v314, 7
        %v316 = vsub.s32 0, %v315
        %v317 = vrot.slane %v312, %v316
        %319 = vmatprep.subr.mxu0 0.0
        %320 = vmatpush1.msra.mxu0 %v295
        %321 = vmatprep.subr.mxu0 0.0
        %322 = vmatpush1.msra.mxu0 %v294
        %323 = vmatprep.subr.mxu0 0.0
        %324 = vmatpush1.msra.mxu0 %v293
        %325 = vmatprep.subr.mxu0 0.0
        %326 = vmatpush1.msra.mxu0 %v292
        %327 = vmatprep.subr.mxu0 0.0
        %328 = vmatpush1.msra.mxu0 %v291
        %329 = vmatprep.subr.mxu0 0.0
        %330 = vmatpush1.msra.mxu0 %v290
        %331 = vmatprep.subr.mxu0 0.0
        %332 = vmatpush1.msra.mxu0 %v289
        %333 = vmatprep.subr.mxu0 0.0
        %334 = vmatpush1.msra.mxu0 %v288
        %335 = vmatprep.subr.mxu0 0.0
        %336 = vmatpush1.msra.mxu0 %v287
        %337 = vmatprep.subr.mxu0 0.0
        %338 = vmatpush1.msra.mxu0 %v286
        %339 = vmatprep.subr.mxu0 0.0
        %340 = vmatpush1.msra.mxu0 %v285
        %341 = vmatprep.subr.mxu0 0.0
        %342 = vmatpush1.msra.mxu0 %v284
        %343 = vmatprep.subr.mxu0 0.0
        %344 = vmatpush1.msra.mxu0 %v283
        %345 = vmatprep.subr.mxu0 0.0
        %346 = vmatpush1.msra.mxu0 %v282
        %347 = vmatprep.subr.mxu0 0.0
        %348 = vmatpush1.msra.mxu0 %v281
        %349 = vmatprep.subr.mxu0 0.0
        %350 = vmatpush1.msra.mxu0 %v280
        %351 = vmatprep.subr.mxu0 0.0
        %352 = vmatpush2.msra.mxu0 %v311
        %353 = vmatprep.subr.mxu0 0.0
        %354 = vmatpush2.msra.mxu0 %v310
        %355 = vmatprep.subr.mxu0 0.0
        %356 = vmatpush2.msra.mxu0 %v309
        %357 = vmatprep.subr.mxu0 0.0
        %358 = vmatpush2.msra.mxu0 %v308
        %359 = vmatprep.subr.mxu0 0.0
        %360 = vmatpush2.msra.mxu0 %v307
        %361 = vmatprep.subr.mxu0 0.0
        %362 = vmatpush2.msra.mxu0 %v306
        %363 = vmatprep.subr.mxu0 0.0
        %364 = vmatpush2.msra.mxu0 %v305
        %365 = vmatprep.subr.mxu0 0.0
        %366 = vmatpush2.msra.mxu0 %v304
        %367 = vmatprep.subr.mxu0 0.0
        %368 = vmatpush2.msra.mxu0 %v303
        %369 = vmatprep.subr.mxu0 0.0
        %370 = vmatpush2.msra.mxu0 %v302
        %371 = vmatprep.subr.mxu0 0.0
        %372 = vmatpush2.msra.mxu0 %v301
        %373 = vmatprep.subr.mxu0 0.0
        %374 = vmatpush2.msra.mxu0 %v300
        %375 = vmatprep.subr.mxu0 0.0
        %376 = vmatpush2.msra.mxu0 %v299
        %377 = vmatprep.subr.mxu0 0.0
        %378 = vmatpush2.msra.mxu0 %v298
        %379 = vmatprep.subr.mxu0 0.0
        %380 = vmatpush2.msra.mxu0 %v297
        %381 = vmatprep.subr.mxu0 0.0
        %382 = vmatpush2.msra.mxu0 %v296
        %383 = vmatprep.mubr.f32.mxu0 %v249
        %384 = vmatmul.mubr.f32.gmra.mxu0 %v248
        %v385 = vpop.f32.mrf.mxu0
        %v386 = vadd.f32 %v317, %v385
        %v387 = vpop.f32.mrf.mxu0
        %388 = vmatprep.mubr.f32.mxu0 %v251
        %389 = vmatmul.mubr.f32.gmra.mxu0 %v250
        %v390 = vpop.f32.mrf.mxu0
        %v391 = vadd.f32 %v317, %v390
        %v392 = vpop.f32.mrf.mxu0
        %393 = vmatprep.mubr.f32.mxu0 %v253
        %394 = vmatmul.mubr.f32.gmra.mxu0 %v252
        %v395 = vpop.f32.mrf.mxu0
        %v396 = vadd.f32 %v317, %v395
        %v397 = vpop.f32.mrf.mxu0
        %398 = vmatprep.mubr.f32.mxu0 %v255
        %399 = vmatmul.mubr.f32.gmra.mxu0 %v254
        %v400 = vpop.f32.mrf.mxu0
        %v401 = vadd.f32 %v317, %v400
        %v402 = vpop.f32.mrf.mxu0
        %403 = vmatprep.mubr.f32.mxu0 %v257
        %404 = vmatmul.mubr.f32.gmra.mxu0 %v256
        %v405 = vpop.f32.mrf.mxu0
        %v406 = vadd.f32 %v317, %v405
        %v407 = vpop.f32.mrf.mxu0
        %408 = vmatprep.mubr.f32.mxu0 %v259
        %409 = vmatmul.mubr.f32.gmra.mxu0 %v258
        %v410 = vpop.f32.mrf.mxu0
        %v411 = vadd.f32 %v317, %v410
        %v412 = vpop.f32.mrf.mxu0
        %413 = vmatprep.mubr.f32.mxu0 %v261
        %414 = vmatmul.mubr.f32.gmra.mxu0 %v260
        %v415 = vpop.f32.mrf.mxu0
        %v416 = vadd.f32 %v317, %v415
        %v417 = vpop.f32.mrf.mxu0
        %418 = vmatprep.mubr.f32.mxu0 %v263
        %419 = vmatmul.mubr.f32.gmra.mxu0 %v262
        %v420 = vpop.f32.mrf.mxu0
        %v421 = vadd.f32 %v317, %v420
        %v422 = vpop.f32.mrf.mxu0
        %423 = vmatprep.mubr.f32.mxu0 %v265
        %424 = vmatmul.mubr.f32.gmra.mxu0 %v264
        %v425 = vpop.f32.mrf.mxu0
        %v426 = vadd.f32 %v317, %v425
        %v427 = vpop.f32.mrf.mxu0
        %428 = vmatprep.mubr.f32.mxu0 %v267
        %429 = vmatmul.mubr.f32.gmra.mxu0 %v266
        %v430 = vpop.f32.mrf.mxu0
        %v431 = vadd.f32 %v317, %v430
        %v432 = vpop.f32.mrf.mxu0
        %433 = vmatprep.mubr.f32.mxu0 %v269
        %434 = vmatmul.mubr.f32.gmra.mxu0 %v268
        %v435 = vpop.f32.mrf.mxu0
        %v436 = vadd.f32 %v317, %v435
        %v437 = vpop.f32.mrf.mxu0
        %438 = vmatprep.mubr.f32.mxu0 %v271
        %439 = vmatmul.mubr.f32.gmra.mxu0 %v270
        %v440 = vpop.f32.mrf.mxu0
        %v441 = vadd.f32 %v317, %v440
        %v442 = vpop.f32.mrf.mxu0
        %443 = vmatprep.mubr.f32.mxu0 %v273
        %444 = vmatmul.mubr.f32.gmra.mxu0 %v272
        %v445 = vpop.f32.mrf.mxu0
        %v446 = vadd.f32 %v317, %v445
        %v447 = vpop.f32.mrf.mxu0
        %448 = vmatprep.mubr.f32.mxu0 %v275
        %449 = vmatmul.mubr.f32.gmra.mxu0 %v274
        %v450 = vpop.f32.mrf.mxu0
        %v451 = vadd.f32 %v317, %v450
        %v452 = vpop.f32.mrf.mxu0
        %453 = vmatprep.mubr.f32.mxu0 %v277
        %454 = vmatmul.mubr.f32.gmra.mxu0 %v276
        %v455 = vpop.f32.mrf.mxu0
        %v456 = vadd.f32 %v317, %v455
        %v457 = vpop.f32.mrf.mxu0
        %458 = vmatprep.mubr.f32.mxu0 %v279
        %459 = vmatmul.mubr.f32.gmra.mxu0 %v278
        %v460 = vpop.f32.mrf.mxu0
        %v461 = vadd.f32 %v317, %v460
        %v462 = vpop.f32.mrf.mxu0
        %463 = vdwg.mxu0
        %v464 = vmax.f32 %v386, 0.0
        %v465 = vmax.f32 %v391, 0.0
        %v466 = vmax.f32 %v396, 0.0
        %v467 = vmax.f32 %v401, 0.0
        %v468 = vmax.f32 %v406, 0.0
        %v469 = vmax.f32 %v411, 0.0
        %v470 = vmax.f32 %v416, 0.0
        %v471 = vmax.f32 %v421, 0.0
        %v472 = vmax.f32 %v426, 0.0
        %v473 = vmax.f32 %v431, 0.0
        %v474 = vmax.f32 %v436, 0.0
        %v475 = vmax.f32 %v441, 0.0
        %v476 = vmax.f32 %v446, 0.0
        %v477 = vmax.f32 %v451, 0.0
        %v478 = vmax.f32 %v456, 0.0
        %v479 = vmax.f32 %v461, 0.0
        %v480 = vld [vmem:[#allocation7] sm:$0xff]
        %v481 = vld [vmem:[#allocation7 + $0x8] sm:$0xff]
        %v482 = vld [vmem:[#allocation7 + $0x10] sm:$0xff]
        %v483 = vld [vmem:[#allocation7 + $0x18] sm:$0xff]
        %v484 = vld [vmem:[#allocation7 + $0x20] sm:$0xff]
        %v485 = vld [vmem:[#allocation7 + $0x28] sm:$0xff]
        %v486 = vld [vmem:[#allocation7 + $0x30] sm:$0xff]
        %v487 = vld [vmem:[#allocation7 + $0x38] sm:$0xff]
        %v488 = vld [vmem:[#allocation7 + $0x40] sm:$0xff]
        %v489 = vld [vmem:[#allocation7 + $0x48] sm:$0xff]
        %v490 = vld [vmem:[#allocation7 + $0x50] sm:$0xff]
        %v491 = vld [vmem:[#allocation7 + $0x58] sm:$0xff]
        %v492 = vld [vmem:[#allocation7 + $0x60] sm:$0xff]
        %v493 = vld [vmem:[#allocation7 + $0x68] sm:$0xff]
        %v494 = vld [vmem:[#allocation7 + $0x70] sm:$0xff]
        %v495 = vld [vmem:[#allocation7 + $0x78] sm:$0xff]
        %496 = vmatprep.subr.mxu0 0.0
        %497 = vmatpush1.msra.mxu0 %v495
        %498 = vmatprep.subr.mxu0 0.0
        %499 = vmatpush1.msra.mxu0 %v494
        %500 = vmatprep.subr.mxu0 0.0
        %501 = vmatpush1.msra.mxu0 %v493
        %502 = vmatprep.subr.mxu0 0.0
        %503 = vmatpush1.msra.mxu0 %v492
        %504 = vmatprep.subr.mxu0 0.0
        %505 = vmatpush1.msra.mxu0 %v491
        %506 = vmatprep.subr.mxu0 0.0
        %507 = vmatpush1.msra.mxu0 %v490
        %508 = vmatprep.subr.mxu0 0.0
        %509 = vmatpush1.msra.mxu0 %v489
        %510 = vmatprep.subr.mxu0 0.0
        %511 = vmatpush1.msra.mxu0 %v488
        %512 = vmatprep.subr.mxu0 0.0
        %513 = vmatpush1.msra.mxu0 %v487
        %514 = vmatprep.subr.mxu0 0.0
        %515 = vmatpush1.msra.mxu0 %v486
        %516 = vmatprep.subr.mxu0 0.0
        %517 = vmatpush1.msra.mxu0 %v485
        %518 = vmatprep.subr.mxu0 0.0
        %519 = vmatpush1.msra.mxu0 %v484
        %520 = vmatprep.subr.mxu0 0.0
        %521 = vmatpush1.msra.mxu0 %v483
        %522 = vmatprep.subr.mxu0 0.0
        %523 = vmatpush1.msra.mxu0 %v482
        %524 = vmatprep.subr.mxu0 0.0
        %525 = vmatpush1.msra.mxu0 %v481
        %526 = vmatprep.subr.mxu0 0.0
        %527 = vmatpush1.msra.mxu0 %v480
        %528 = vmatprep.subr.mxu0 0.0
        %529 = vmatpush2.msra.mxu0 0.0
        %530 = vmatprep.subr.mxu0 0.0
        %531 = vmatpush2.msra.mxu0 0.0
        %532 = vmatprep.subr.mxu0 0.0
        %533 = vmatpush2.msra.mxu0 0.0
        %534 = vmatprep.subr.mxu0 0.0
        %535 = vmatpush2.msra.mxu0 0.0
        %536 = vmatprep.subr.mxu0 0.0
        %537 = vmatpush2.msra.mxu0 0.0
        %538 = vmatprep.subr.mxu0 0.0
        %539 = vmatpush2.msra.mxu0 0.0
        %540 = vmatprep.subr.mxu0 0.0
        %541 = vmatpush2.msra.mxu0 0.0
        %542 = vmatprep.subr.mxu0 0.0
        %543 = vmatpush2.msra.mxu0 0.0
        %544 = vmatprep.subr.mxu0 0.0
        %545 = vmatpush2.msra.mxu0 0.0
        %546 = vmatprep.subr.mxu0 0.0
        %547 = vmatpush2.msra.mxu0 0.0
        %548 = vmatprep.subr.mxu0 0.0
        %549 = vmatpush2.msra.mxu0 0.0
        %550 = vmatprep.subr.mxu0 0.0
        %551 = vmatpush2.msra.mxu0 0.0
        %552 = vmatprep.subr.mxu0 0.0
        %553 = vmatpush2.msra.mxu0 0.0
        %554 = vmatprep.subr.mxu0 0.0
        %555 = vmatpush2.msra.mxu0 0.0
        %556 = vmatprep.subr.mxu0 0.0
        %557 = vmatpush2.msra.mxu0 0.0
        %558 = vmatprep.subr.mxu0 0.0
        %559 = vmatpush2.msra.mxu0 0.0
        %560 = vmatprep.mubr.f32.mxu0 0.0
        %561 = vmatmul.mubr.f32.gmra.mxu0 %v464
        %v562 = vpop.f32.mrf.mxu0
        %v563 = vadd.f32 0.0, %v562
        %v564 = vpop.f32.mrf.mxu0
        %565 = vmatprep.mubr.f32.mxu0 0.0
        %566 = vmatmul.mubr.f32.gmra.mxu0 %v465
        %v567 = vpop.f32.mrf.mxu0
        %v568 = vadd.f32 0.0, %v567
        %v569 = vpop.f32.mrf.mxu0
        %570 = vmatprep.mubr.f32.mxu0 0.0
        %571 = vmatmul.mubr.f32.gmra.mxu0 %v466
        %v572 = vpop.f32.mrf.mxu0
        %v573 = vadd.f32 0.0, %v572
        %v574 = vpop.f32.mrf.mxu0
        %575 = vmatprep.mubr.f32.mxu0 0.0
        %576 = vmatmul.mubr.f32.gmra.mxu0 %v467
        %v577 = vpop.f32.mrf.mxu0
        %v578 = vadd.f32 0.0, %v577
        %v579 = vpop.f32.mrf.mxu0
        %580 = vmatprep.mubr.f32.mxu0 0.0
        %581 = vmatmul.mubr.f32.gmra.mxu0 %v468
        %v582 = vpop.f32.mrf.mxu0
        %v583 = vadd.f32 0.0, %v582
        %v584 = vpop.f32.mrf.mxu0
        %585 = vmatprep.mubr.f32.mxu0 0.0
        %586 = vmatmul.mubr.f32.gmra.mxu0 %v469
        %v587 = vpop.f32.mrf.mxu0
        %v588 = vadd.f32 0.0, %v587
        %v589 = vpop.f32.mrf.mxu0
        %590 = vmatprep.mubr.f32.mxu0 0.0
        %591 = vmatmul.mubr.f32.gmra.mxu0 %v470
        %v592 = vpop.f32.mrf.mxu0
        %v593 = vadd.f32 0.0, %v592
        %v594 = vpop.f32.mrf.mxu0
        %595 = vmatprep.mubr.f32.mxu0 0.0
        %596 = vmatmul.mubr.f32.gmra.mxu0 %v471
        %v597 = vpop.f32.mrf.mxu0
        %v598 = vadd.f32 0.0, %v597
        %v599 = vpop.f32.mrf.mxu0
        %600 = vmatprep.mubr.f32.mxu0 0.0
        %601 = vmatmul.mubr.f32.gmra.mxu0 %v472
        %v602 = vpop.f32.mrf.mxu0
        %v603 = vadd.f32 0.0, %v602
        %v604 = vpop.f32.mrf.mxu0
        %605 = vmatprep.mubr.f32.mxu0 0.0
        %606 = vmatmul.mubr.f32.gmra.mxu0 %v473
        %v607 = vpop.f32.mrf.mxu0
        %v608 = vadd.f32 0.0, %v607
        %v609 = vpop.f32.mrf.mxu0
        %610 = vmatprep.mubr.f32.mxu0 0.0
        %611 = vmatmul.mubr.f32.gmra.mxu0 %v474
        %v612 = vpop.f32.mrf.mxu0
        %v613 = vadd.f32 0.0, %v612
        %v614 = vpop.f32.mrf.mxu0
        %615 = vmatprep.mubr.f32.mxu0 0.0
        %616 = vmatmul.mubr.f32.gmra.mxu0 %v475
        %v617 = vpop.f32.mrf.mxu0
        %v618 = vadd.f32 0.0, %v617
        %v619 = vpop.f32.mrf.mxu0
        %620 = vmatprep.mubr.f32.mxu0 0.0
        %621 = vmatmul.mubr.f32.gmra.mxu0 %v476
        %v622 = vpop.f32.mrf.mxu0
        %v623 = vadd.f32 0.0, %v622
        %v624 = vpop.f32.mrf.mxu0
        %625 = vmatprep.mubr.f32.mxu0 0.0
        %626 = vmatmul.mubr.f32.gmra.mxu0 %v477
        %v627 = vpop.f32.mrf.mxu0
        %v628 = vadd.f32 0.0, %v627
        %v629 = vpop.f32.mrf.mxu0
        %630 = vmatprep.mubr.f32.mxu0 0.0
        %631 = vmatmul.mubr.f32.gmra.mxu0 %v478
        %v632 = vpop.f32.mrf.mxu0
        %v633 = vadd.f32 0.0, %v632
        %v634 = vpop.f32.mrf.mxu0
        %635 = vmatprep.mubr.f32.mxu0 0.0
        %636 = vmatmul.mubr.f32.gmra.mxu0 %v479
        %v637 = vpop.f32.mrf.mxu0
        %v638 = vadd.f32 0.0, %v637
        %v639 = vpop.f32.mrf.mxu0
        %640 = vdwg.mxu0
        %641 = vst [vmem:[%s245] sm:$0xff] %v563
        %642 = vst [vmem:[%s245 + $0x8] sm:$0xff] %v568
        %643 = vst [vmem:[%s245 + $0x10] sm:$0xff] %v573
        %644 = vst [vmem:[%s245 + $0x18] sm:$0xff] %v578
        %645 = vst [vmem:[%s245 + $0x20] sm:$0xff] %v583
        %646 = vst [vmem:[%s245 + $0x28] sm:$0xff] %v588
        %647 = vst [vmem:[%s245 + $0x30] sm:$0xff] %v593
        %648 = vst [vmem:[%s245 + $0x38] sm:$0xff] %v598
        %649 = vst [vmem:[%s245 + $0x40] sm:$0xff] %v603
        %650 = vst [vmem:[%s245 + $0x48] sm:$0xff] %v608
        %651 = vst [vmem:[%s245 + $0x50] sm:$0xff] %v613
        %652 = vst [vmem:[%s245 + $0x58] sm:$0xff] %v618
        %653 = vst [vmem:[%s245 + $0x60] sm:$0xff] %v623
        %654 = vst [vmem:[%s245 + $0x68] sm:$0xff] %v628
        %655 = vst [vmem:[%s245 + $0x70] sm:$0xff] %v633
        %656 = vst [vmem:[%s245 + $0x78] sm:$0xff] %v638
        %s657 = sand.u32 %s119, 1
        %s658 = scalar_lea.sflag [#allocation4], %s657
        %s659 = sand.u32 %s119, 1
        %s660 = smul.addr %s659, 128
        %s661 = scalar_lea.vmem [#allocation8], %s660
        // Predicated region
        $region49: #{tpu_custom_call.1} parent=35 // pred_check
          %p662 = pneg %p129
        $region50: #{tpu_custom_call.1} parent=35 // pred_check_branch
          %664 = sbr.rel (%p662) target = $region52
        $region51: #{tpu_custom_call.1} parent=35 // pred_region
          %s665 = smul.u32 16, %s22
          %s667 = ssub.s32 2048, 2048
          %668 = vsyncadd %s658, %s667
          %s669 = smul.addr %s665, 128
          %s670 = scalar_lea.hbm %s4, %s669
          %s671 = sshll.u32 %s661, 4
          %s672 = int_to_ptr.vmem [resolvable:$true] %s671
          %677 = dma.vmem_to_hbm [thread:$0]  %s672, 2048, %s670, %s658, 128, 128, 8
        $region52: #{tpu_custom_call.1} parent=35 // pred_fallthru
          _
      $region36: #{tpu_custom_call.1} parent=5 // pred_fallthru
        _
      %p678 = scmp.le.s32.totalorder 2, %s17
      // Predicated region
      $region53: #{tpu_custom_call.1} parent=5 // pred_check
        %p679 = pneg %p678
      $region54: #{tpu_custom_call.1} parent=5 // pred_check_branch
        %681 = sbr.rel (%p679) target = $region56
      $region55: #{tpu_custom_call.1} parent=5 // pred_region
        %s682 = ssub.s32 %s17, 2
        // Predicated region
        $region57: #{tpu_custom_call.1} parent=55 // pred_check
          %p683 = pneg %p135
        $region58: #{tpu_custom_call.1} parent=55 // pred_check_branch
          %685 = sbr.rel (%p683) target = $region60
        $region59: #{tpu_custom_call.1} parent=55 // pred_region
          %s686 = sand.u32 %s120, 1
          %s687 = scalar_lea.sflag [#allocation4], %s686
          %s688 = sand.u32 %s120, 1
          %s689 = smul.addr %s688, 128
          %s690 = scalar_lea.vmem [#allocation8], %s689
          %691 = dma.done %s687, 2048
        $region60: #{tpu_custom_call.1} parent=55 // pred_fallthru
          _
      $region56: #{tpu_custom_call.1} parent=5 // pred_fallthru
        _
    $region6: #{tpu_custom_call.1} parent=1 // loop_footer
      %s21 = sadd.s32 1, %s17
    $region7: #{tpu_custom_call.1} parent=1 // loop_footer_branch
      %16 = sbr.rel target = $region3
    $region8: #{tpu_custom_call.1} parent=1 // loop_exit
      _
    %692 = vsyncpa [#allocation3], 1
    %s693 = scalar_lea.sflag [#allocation3], 1
    %694 = vsyncpa %s693, 1
    %695 = vsyncpa [#allocation6], 1
    %696 = vsyncpa [#allocation4], 1
    %s697 = scalar_lea.sflag [#allocation4], 1
    %698 = vsyncpa %s697, 1

</llo_original>
